<compile_context>
chip_gen: v7x
topology: tpu7x:2x2x1
jax: 0.10.0
libtpu: 0.0.40
codegen_flags: <defaults>
</compile_context>

<pallas_src>
import functools

import jax
import jax.numpy as jnp
from jax.experimental import pallas as pl
from jax.experimental.pallas import tpu as pltpu


_EPS = 1e-5
_NUM_CORE_GROUPS = 2                 # megacore split of pass 1 (v7x); harmless on 1-TC chips
_VMEM_LIMIT = 48 * 1024 * 1024       # <= v7x 64 MiB physical; plenty on v5e/v6e
_TILE_BUDGET = 20 * 1024 * 1024      # double-buffered streaming-tile budget


def _stats_kernel(p_ref, w_ref, stats_ref):
    """Pass 1 (recompute path): per-channel sum / sum-of-squares of the conv.

    p_ref:     (TM, Kpad)   lane-dense im2col patches for this M tile
    w_ref:     (Kpad, Cpad) folded conv weights (resident across the grid)
    stats_ref: (8, Cpad)    per-core-group accumulator; row0 = sum, row1 = sumsq
    """
    i = pl.program_id(1)

    @pl.when(i == 0)
    def _():
        stats_ref[...] = jnp.zeros_like(stats_ref)

    acc = jnp.dot(p_ref[...], w_ref[...], preferred_element_type=jnp.float32)
    stats_ref[0:1, :] += jnp.sum(acc, axis=0, keepdims=True)
    stats_ref[1:2, :] += jnp.sum(acc * acc, axis=0, keepdims=True)


def _conv_stats_kernel(p_ref, w_ref, conv_ref, stats_ref):
    """Pass 1 (materialize path): conv output tile + partial statistics."""
    i = pl.program_id(1)

    @pl.when(i == 0)
    def _():
        stats_ref[...] = jnp.zeros_like(stats_ref)

    acc = jnp.dot(p_ref[...], w_ref[...], preferred_element_type=jnp.float32)
    conv_ref[...] = acc
    stats_ref[0:1, :] += jnp.sum(acc, axis=0, keepdims=True)
    stats_ref[1:2, :] += jnp.sum(acc * acc, axis=0, keepdims=True)


def _matmul_bn_relu_kernel(p_ref, w_ref, scale_ref, shift_ref, o_ref):
    """Pass 2 (recompute path): conv matmul + y = relu(conv*scale + shift)."""
    acc = jnp.dot(p_ref[...], w_ref[...], preferred_element_type=jnp.float32)
    o_ref[...] = jnp.maximum(acc * scale_ref[...] + shift_ref[...], 0.0)


def _bn_relu_kernel(conv_ref, scale_ref, shift_ref, o_ref):
    """Pass 2 (materialize path): streaming y = relu(conv*scale + shift)."""
    o_ref[...] = jnp.maximum(conv_ref[...] * scale_ref[...] + shift_ref[...], 0.0)


def _round_up(v, mult):
    return ((v + mult - 1) // mult) * mult


def _pick_m_tile(m_real, kpad, cpad):
    """Largest M tile whose double-buffered streaming footprint fits the budget."""
    tm = 256
    for cand in (4096, 2048, 1024, 512, 256):
        need = (2 * cand * (kpad + cpad) + 2 * kpad * cpad) * 4
        if need <= _TILE_BUDGET:
            tm = cand
            break
    # Don't over-pad tiny problems: at most ~one tile per core group, 8-row aligned.
    tm = min(tm, _round_up(pl.cdiv(m_real, _NUM_CORE_GROUPS), 8))
    return max(tm, 8)


@functools.partial(jax.jit, static_argnames=("compute_dtype",))
def conv_batchnorm_relu(x, w, b, gamma, beta, *, compute_dtype=jnp.float32):
    """x: (N, Cin, D, H, W) f32 NCDHW; w: (Cout, Cin, 3, 3, 3); b/gamma/beta: (Cout,).
    Returns (N, Cout, D, H, W) f32 = ReLU(BatchNorm3d_train(Conv3d_k3p1(x) + b)).

    The conv bias `b` is intentionally unused: a per-channel constant added before
    train-mode BatchNorm cancels exactly under mean subtraction.  (It would NOT
    cancel with eval-mode running statistics — do not reuse this kernel there.)

    compute_dtype=jnp.bfloat16 halves patch HBM traffic and ~4x's MXU throughput
    on v6e/v7x but will not meet a 1e-4 tolerance vs. the f32 reference.
    """
    del b
    N, Cin, D, H, W = x.shape
    Cout = w.shape[0]
    M = N * D * H * W
    K = 27 * Cin
    Kpad = _round_up(K, 128)
    Cpad = _round_up(Cout, 128)
    TM = _pick_m_tile(M, Kpad, Cpad)
    Mpad = _round_up(M, TM * _NUM_CORE_GROUPS)
    n_per_core = Mpad // (TM * _NUM_CORE_GROUPS)
    n_tiles = Mpad // TM

    # --- glue (plain JAX): layout + zero pad + lane-dense im2col (Mpad, Kpad) ---
    # TODO(synk): build the patches inside pass 1 from a halo'd NDHWC slab (drops the
    # 27*Cin-wide HBM slab); skipped because tiny Cin / W make the in-kernel gather
    # lane-hostile at the shapes this block is used at.
    # TODO(synk): accept channels-last activations to avoid the two NCDHW<->NDHWC
    # transposes (each is a full extra HBM pass of the activation tensor).
    x_ndhwc = jnp.transpose(x, (0, 2, 3, 4, 1)).astype(jnp.float32)
    xp = jnp.pad(x_ndhwc, ((0, 0), (1, 1), (1, 1), (1, 1), (0, 0)))
    cols = []
    for kd in range(3):
        for kh in range(3):
            for kw in range(3):
                cols.append(
                    xp[:, kd:kd + D, kh:kh + H, kw:kw + W, :].reshape(M, Cin))
    patches = jnp.concatenate(cols, axis=1)                      # (M, 27*Cin)
    patches = jnp.pad(patches, ((0, Mpad - M), (0, Kpad - K)))   # (Mpad, Kpad)
    patches = patches.astype(compute_dtype)

    wk = jnp.transpose(w, (2, 3, 4, 1, 0)).reshape(K, Cout).astype(jnp.float32)
    wk = jnp.pad(wk, ((0, Kpad - K), (0, Cpad - Cout)))          # (Kpad, Cpad)
    wk = wk.astype(compute_dtype)
    g2 = jnp.pad(gamma.astype(jnp.float32).reshape(1, Cout),
                 ((0, 0), (0, Cpad - Cout)))
    bt2 = jnp.pad(beta.astype(jnp.float32).reshape(1, Cout),
                  ((0, 0), (0, Cpad - Cout)))

    # Cheap contraction => recompute the conv in pass 2 and never materialize it.
    recompute = Kpad <= 2 * Cpad

    patch_spec = pl.BlockSpec((TM, Kpad), lambda c, i: (c * n_per_core + i, 0))
    weight_spec = pl.BlockSpec((Kpad, Cpad), lambda c, i: (0, 0))
    stats_spec = pl.BlockSpec((8, Cpad), lambda c, i: (c, 0))
    pass1_params = pltpu.CompilerParams(
        dimension_semantics=("parallel", "arbitrary"),   # megacore-shard M tiles (v7x)
        vmem_limit_bytes=_VMEM_LIMIT)

    if recompute:
        # Pass 1: statistics only (no (M, Cpad) HBM round trip).
        stats_all = pl.pallas_call(
            _stats_kernel,
            out_shape=jax.ShapeDtypeStruct((8 * _NUM_CORE_GROUPS, Cpad), jnp.float32),
            grid=(_NUM_CORE_GROUPS, n_per_core),
            in_specs=[patch_spec, weight_spec],
            out_specs=stats_spec,
            compiler_params=pass1_params,
        )(patches, wk)
        conv_out = None
    else:
        # Pass 1: conv tile stream + statistics.
        conv_out, stats_all = pl.pallas_call(
            _conv_stats_kernel,
            out_shape=(jax.ShapeDtypeStruct((Mpad, Cpad), jnp.float32),
                       jax.ShapeDtypeStruct((8 * _NUM_CORE_GROUPS, Cpad), jnp.float32)),
            grid=(_NUM_CORE_GROUPS, n_per_core),
            in_specs=[patch_spec, weight_spec],
            out_specs=(
                pl.BlockSpec((TM, Cpad), lambda c, i: (c * n_per_core + i, 0)),
                stats_spec),
            compiler_params=pass1_params,
        )(patches, wk)

    # Tiny JAX glue: fold batch statistics into per-channel scale/shift ONCE
    # (hoisted out of the per-tile pass-2 body). Zero-padded rows/channels
    # contribute nothing; inv_m uses the real M, so the stats are exact.
    # TODO(synk): Welford / pilot-mean merge for very large M (E[x^2]-E[x]^2 in
    # f32 loses digits when |mean| >> std).
    st = stats_all.reshape(_NUM_CORE_GROUPS, 8, Cpad).sum(axis=0)   # (8, Cpad)
    inv_m = 1.0 / M
    mean = st[0:1, :] * inv_m                                       # (1, Cpad)
    var = jnp.maximum(st[1:2, :] * inv_m - mean * mean, 0.0)
    scale = g2 * jax.lax.rsqrt(var + _EPS)                          # (1, Cpad)
    shift = bt2 - mean * scale                                      # (1, Cpad)

    pass2_params = pltpu.CompilerParams(
        dimension_semantics=("parallel",),               # megacore split on v7x
        vmem_limit_bytes=_VMEM_LIMIT)
    vec_spec = pl.BlockSpec((1, Cpad), lambda i: (0, 0))

    if recompute:
        out2d = pl.pallas_call(
            _matmul_bn_relu_kernel,
            out_shape=jax.ShapeDtypeStruct((Mpad, Cpad), jnp.float32),
            grid=(n_tiles,),
            in_specs=[
                pl.BlockSpec((TM, Kpad), lambda i: (i, 0)),
                pl.BlockSpec((Kpad, Cpad), lambda i: (0, 0)),
                vec_spec, vec_spec,
            ],
            out_specs=pl.BlockSpec((TM, Cpad), lambda i: (i, 0)),
            compiler_params=pass2_params,
        )(patches, wk, scale, shift)
    else:
        out2d = pl.pallas_call(
            _bn_relu_kernel,
            out_shape=jax.ShapeDtypeStruct((Mpad, Cpad), jnp.float32),
            grid=(n_tiles,),
            in_specs=[
                pl.BlockSpec((TM, Cpad), lambda i: (i, 0)),
                vec_spec, vec_spec,
            ],
            out_specs=pl.BlockSpec((TM, Cpad), lambda i: (i, 0)),
            input_output_aliases={0: 0},                 # normalize in place
            compiler_params=pass2_params,
        )(conv_out, scale, shift)

    out = out2d[:M, :Cout].reshape(N, D, H, W, Cout)
    return jnp.transpose(out, (0, 4, 1, 2, 3))  # back to NCDHW


def _reference(x, w, b, gamma, beta):
    """Pure-JAX reference matching PyTorch ConvBatchNorm.forward (train mode)."""
    y = jax.lax.conv_general_dilated(
        x, w, window_strides=(1, 1, 1),
        padding=((1, 1), (1, 1), (1, 1)),
        dimension_numbers=("NCDHW", "OIDHW", "NCDHW"),
    )
    y = y + b[None, :, None, None, None]
    mean = jnp.mean(y, axis=(0, 2, 3, 4), keepdims=True)
    var = jnp.mean((y - mean) ** 2, axis=(0, 2, 3, 4), keepdims=True)
    yn = (y - mean) * jax.lax.rsqrt(var + _EPS)
    yn = yn * gamma[None, :, None, None, None] + beta[None, :, None, None, None]
    return jnp.maximum(yn, 0.0)


def _run_case(name, N, Cin, Cout, D, H, W, key, tol):
    kx, kw, kb, kg, kbt = jax.random.split(key, 5)
    x = jax.random.normal(kx, (N, Cin, D, H, W), dtype=jnp.float32)
    w = jax.random.normal(kw, (Cout, Cin, 3, 3, 3), dtype=jnp.float32) * 0.1
    b = jax.random.normal(kb, (Cout,), dtype=jnp.float32) * 0.1
    gamma = 1.0 + 0.1 * jax.random.normal(kg, (Cout,), dtype=jnp.float32)
    beta = 0.1 * jax.random.normal(kbt, (Cout,), dtype=jnp.float32)

    out = jax.block_until_ready(conv_batchnorm_relu(x, w, b, gamma, beta))
    ref = jax.block_until_ready(_reference(x, w, b, gamma, beta))

    assert out.shape == (N, Cout, D, H, W), (name, out.shape)
    max_err = float(jnp.max(jnp.abs(out - ref)))
    assert jnp.allclose(out, ref, rtol=tol, atol=tol), (name, max_err)


if __name__ == "__main__":
    key = jax.random.PRNGKey(0)
    k1, k2, k3 = jax.random.split(key, 3)
    # Small shapes consistent with a 3D U-Net block (recompute path, 1 tile/core).
    _run_case("tiny", 2, 4, 8, 8, 8, 8, k1, tol=1e-4)
    # Multi-tile accumulation on the recompute path (Kpad <= 2*Cpad).
    _run_case("multi_tile_recompute", 4, 4, 8, 16, 16, 16, k2, tol=2e-4)
    # Wide contraction -> materialized-conv path with in-place BN/ReLU pass.
    _run_case("wide_k_materialize", 2, 16, 8, 16, 16, 16, k3, tol=2e-4)
    print("KERNEL_OK")
</pallas_src>

<mosaic_0001>
module attributes {stable_mosaic.version = 11 : i64} {
  func.func @_stats_kernel(%arg0: i32, %arg1: i32, %arg2: memref<512x128xf32, #tpu.memory_space<vmem>>, %arg3: memref<128x128xf32, #tpu.memory_space<vmem>>, %arg4: memref<8x128xf32, #tpu.memory_space<vmem>>) attributes {dimension_semantics = [#tpu.dimension_semantics<parallel>, #tpu.dimension_semantics<arbitrary>], iteration_bounds = array<i64: 2, 1>, scalar_prefetch = 0 : i64, scratch_operands = 0 : i64, tpu.core_type = #tpu.core_type<tc>, window_params = [{transform_indices = @transform_0, window_bounds = array<i64: 512, 128>}, {pipeline_mode = #tpu.pipeline_mode<synchronous>, transform_indices = @transform_1, window_bounds = array<i64: 128, 128>}, {transform_indices = @transform_2, window_bounds = array<i64: 8, 128>}]} {
    %c0_i32 = arith.constant 0 : i32
    %0 = arith.cmpi eq, %arg1, %c0_i32 : i32
    %1 = arith.extui %0 : i1 to i32
    %c0_i32_0 = arith.constant 0 : i32
    %2 = arith.cmpi ne, %1, %c0_i32_0 : i32
    scf.if %2 {
      %cst_13 = arith.constant 0.000000e+00 : f32
      %17 = vector.broadcast %cst_13 : f32 to vector<8x128xf32>
      %c0_14 = arith.constant 0 : index
      %c0_15 = arith.constant 0 : index
      %18 = vector.load %arg4[%c0_14, %c0_15] : memref<8x128xf32, #tpu.memory_space<vmem>>, vector<8x128xf32>
      tpu.vector_store %arg4[%c0_14, %c0_15], %17 {strides = array<i32>} : memref<8x128xf32, #tpu.memory_space<vmem>>, vector<8x128xf32>,
    } else {
    }
    %c0 = arith.constant 0 : index
    %c0_1 = arith.constant 0 : index
    %3 = vector.load %arg2[%c0, %c0_1] : memref<512x128xf32, #tpu.memory_space<vmem>>, vector<512x128xf32>
    %c0_2 = arith.constant 0 : index
    %c0_3 = arith.constant 0 : index
    %4 = vector.load %arg3[%c0_2, %c0_3] : memref<128x128xf32, #tpu.memory_space<vmem>>, vector<128x128xf32>
    %cst = arith.constant dense<0.000000e+00> : vector<512x128xf32>
    %5 = tpu.matmul %3, %4, %cst {dimension_numbers = #tpu.dot_dimension_numbers<[1], [0], [0], [1], [0, 0, 1, 1], [], []>} : vector<512x128xf32>, vector<128x128xf32>, vector<512x128xf32> -> vector<512x128xf32>
    %c0_4 = arith.constant 0 : index
    %c0_5 = arith.constant 0 : index
    %6 = vector.load %arg4[%c0_4, %c0_5] : memref<8x128xf32, #tpu.memory_space<vmem>>, vector<1x128xf32>
    %cst_6 = arith.constant dense<0.000000e+00> : vector<128xf32>
    %7 = vector.multi_reduction <add>, %5, %cst_6 [0] : vector<512x128xf32> to vector<128xf32>
    %8 = vector.shape_cast %7 : vector<128xf32> to vector<1x128xf32>
    %9 = arith.addf %6, %8 : vector<1x128xf32>
    %c0_7 = arith.constant 0 : index
    %c0_8 = arith.constant 0 : index
    %10 = vector.load %arg4[%c0_7, %c0_8] : memref<8x128xf32, #tpu.memory_space<vmem>>, vector<1x128xf32>
    tpu.vector_store %arg4[%c0_7, %c0_8], %9 {strides = array<i32>} : memref<8x128xf32, #tpu.memory_space<vmem>>, vector<1x128xf32>,
    %c1 = arith.constant 1 : index
    %c0_9 = arith.constant 0 : index
    %11 = vector.load %arg4[%c1, %c0_9] : memref<8x128xf32, #tpu.memory_space<vmem>>, vector<1x128xf32>
    %12 = arith.mulf %5, %5 : vector<512x128xf32>
    %cst_10 = arith.constant dense<0.000000e+00> : vector<128xf32>
    %13 = vector.multi_reduction <add>, %12, %cst_10 [0] : vector<512x128xf32> to vector<128xf32>
    %14 = vector.shape_cast %13 : vector<128xf32> to vector<1x128xf32>
    %15 = arith.addf %11, %14 : vector<1x128xf32>
    %c1_11 = arith.constant 1 : index
    %c0_12 = arith.constant 0 : index
    %16 = vector.load %arg4[%c1_11, %c0_12] : memref<8x128xf32, #tpu.memory_space<vmem>>, vector<1x128xf32>
    tpu.vector_store %arg4[%c1_11, %c0_12], %15 {strides = array<i32>} : memref<8x128xf32, #tpu.memory_space<vmem>>, vector<1x128xf32>,
    return
  }
  func.func @transform_0(%arg0: i32, %arg1: i32) -> (i32, i32) {
    %c1_i32 = arith.constant 1 : i32
    %0 = arith.muli %arg0, %c1_i32 : i32
    %1 = arith.addi %0, %arg1 : i32
    %c0_i32 = arith.constant 0 : i32
    %c0_i32_0 = arith.constant 0 : i32
    return %1, %c0_i32 : i32, i32
  }
  func.func @transform_1(%arg0: i32, %arg1: i32) -> (i32, i32) {
    %c0_i32 = arith.constant 0 : i32
    %c0_i32_0 = arith.constant 0 : i32
    %c0_i32_1 = arith.constant 0 : i32
    return %c0_i32, %c0_i32_0 : i32, i32
  }
  func.func @transform_2(%arg0: i32, %arg1: i32) -> (i32, i32) {
    %c0_i32 = arith.constant 0 : i32
    %c0_i32_0 = arith.constant 0 : i32
    return %arg0, %c0_i32 : i32, i32
  }
}

module attributes {stable_mosaic.version = 11 : i64} {
  func.func @_matmul_bn_relu_kernel(%arg0: i32, %arg1: memref<512x128xf32, #tpu.memory_space<vmem>>, %arg2: memref<128x128xf32, #tpu.memory_space<vmem>>, %arg3: memref<1x128xf32, #tpu.memory_space<vmem>>, %arg4: memref<1x128xf32, #tpu.memory_space<vmem>>, %arg5: memref<512x128xf32, #tpu.memory_space<vmem>>) attributes {dimension_semantics = [#tpu.dimension_semantics<parallel>], iteration_bounds = array<i64: 2>, scalar_prefetch = 0 : i64, scratch_operands = 0 : i64, tpu.core_type = #tpu.core_type<tc>, window_params = [{transform_indices = @transform_0, window_bounds = array<i64: 512, 128>}, {pipeline_mode = #tpu.pipeline_mode<synchronous>, transform_indices = @transform_1, window_bounds = array<i64: 128, 128>}, {pipeline_mode = #tpu.pipeline_mode<synchronous>, transform_indices = @transform_2, window_bounds = array<i64: 1, 128>}, {pipeline_mode = #tpu.pipeline_mode<synchronous>, transform_indices = @transform_3, window_bounds = array<i64: 1, 128>}, {transform_indices = @transform_4, window_bounds = array<i64: 512, 128>}]} {
    %c0 = arith.constant 0 : index
    %c0_0 = arith.constant 0 : index
    %0 = vector.load %arg1[%c0, %c0_0] : memref<512x128xf32, #tpu.memory_space<vmem>>, vector<512x128xf32>
    %c0_1 = arith.constant 0 : index
    %c0_2 = arith.constant 0 : index
    %1 = vector.load %arg2[%c0_1, %c0_2] : memref<128x128xf32, #tpu.memory_space<vmem>>, vector<128x128xf32>
    %cst = arith.constant dense<0.000000e+00> : vector<512x128xf32>
    %2 = tpu.matmul %0, %1, %cst {dimension_numbers = #tpu.dot_dimension_numbers<[1], [0], [0], [1], [0, 0, 1, 1], [], []>} : vector<512x128xf32>, vector<128x128xf32>, vector<512x128xf32> -> vector<512x128xf32>
    %c0_3 = arith.constant 0 : index
    %c0_4 = arith.constant 0 : index
    %3 = vector.load %arg3[%c0_3, %c0_4] : memref<1x128xf32, #tpu.memory_space<vmem>>, vector<1x128xf32>
    %4 = vector.broadcast %3 : vector<1x128xf32> to vector<512x128xf32>
    %5 = arith.mulf %2, %4 : vector<512x128xf32>
    %c0_5 = arith.constant 0 : index
    %c0_6 = arith.constant 0 : index
    %6 = vector.load %arg4[%c0_5, %c0_6] : memref<1x128xf32, #tpu.memory_space<vmem>>, vector<1x128xf32>
    %7 = vector.broadcast %6 : vector<1x128xf32> to vector<512x128xf32>
    %8 = arith.addf %5, %7 : vector<512x128xf32>
    %cst_7 = arith.constant 0.000000e+00 : f32
    %9 = vector.broadcast %cst_7 : f32 to vector<512x128xf32>
    %10 = arith.maximumf %8, %9 : vector<512x128xf32>
    %c0_8 = arith.constant 0 : index
    %c0_9 = arith.constant 0 : index
    %11 = vector.load %arg5[%c0_8, %c0_9] : memref<512x128xf32, #tpu.memory_space<vmem>>, vector<512x128xf32>
    tpu.vector_store %arg5[%c0_8, %c0_9], %10 {strides = array<i32>} : memref<512x128xf32, #tpu.memory_space<vmem>>, vector<512x128xf32>,
    return
  }
  func.func @transform_0(%arg0: i32) -> (i32, i32) {
    %c0_i32 = arith.constant 0 : i32
    %c0_i32_0 = arith.constant 0 : i32
    return %arg0, %c0_i32 : i32, i32
  }
  func.func @transform_1(%arg0: i32) -> (i32, i32) {
    %c0_i32 = arith.constant 0 : i32
    %c0_i32_0 = arith.constant 0 : i32
    %c0_i32_1 = arith.constant 0 : i32
    return %c0_i32, %c0_i32_0 : i32, i32
  }
  func.func @transform_2(%arg0: i32) -> (i32, i32) {
    %c0_i32 = arith.constant 0 : i32
    %c0_i32_0 = arith.constant 0 : i32
    %c0_i32_1 = arith.constant 0 : i32
    return %c0_i32, %c0_i32_0 : i32, i32
  }
  func.func @transform_3(%arg0: i32) -> (i32, i32) {
    %c0_i32 = arith.constant 0 : i32
    %c0_i32_0 = arith.constant 0 : i32
    %c0_i32_1 = arith.constant 0 : i32
    return %c0_i32, %c0_i32_0 : i32, i32
  }
  func.func @transform_4(%arg0: i32) -> (i32, i32) {
    %c0_i32 = arith.constant 0 : i32
    %c0_i32_0 = arith.constant 0 : i32
    return %arg0, %c0_i32 : i32, i32
  }
}

</mosaic_0001>

<llo_original>
// kernel: conv_batchnorm_relu.2
$region0: #{conv_batchnorm_relu.2}
  #allocation0 [shape = 'u32[]', space=smem, size = 0x4, offset = 0x4, fixed_abs, tag = 'smem constant byte address 0x4 - core index']
  #allocation1 [shape = 'u32[144,128]{1,0:T(1,128)}', space=vmem, size = 0x12000, scoped, tag = 'internal scratch']
  %s0 = inlined_call_operand.vmem [shape: f32[1024,128], index: 0, kind: input, shape index: {}]
  %s1 = inlined_call_operand.vmem [shape: f32[128,128], index: 1, kind: input, shape index: {}]
  %s2 = inlined_call_operand.vmem [shape: f32[16,128], index: 2, kind: output, shape index: {}]
  %s3 = sld [smem:[#allocation0]]
  $region45: #{conv_batchnorm_relu.2} parent=0
    _
  %s5 = ssub.s32 1, %s3
  %s6 = scalar_select 0, %s5, %s3
  loop: start=0, step=1, limit=4
  $region2: #{conv_batchnorm_relu.2} parent=0 // loop_pre_header
    _
  $region3: #{conv_batchnorm_relu.2} parent=0 // loop_header
    %s8 = sphi 0, %s12
    %p9 = scmp.ge.s32.totalorder %s8, 4
    %s15 = sphi 0, %s27
    %s16 = sphi 0, %s23
    %s17 = sphi 0, %s15
    %s18 = sphi 0, %s16
    %s19 = sphi 0, %s17
    %s20 = sphi 0, %s18
    %s32 = sphi 0, %s34
    %s35 = sphi 0, %s32
    %s36 = sphi 0, %s35
    %s52 = sphi 0, %s36
    %s56 = sphi 0, %s56
    %s58 = sphi 0, %s56
    %s59 = sphi 0, %s58
    %s73 = sphi 0, %s59
    %s79 = sphi 0, %s81
    %s82 = sphi 0, %s79
    %s83 = sphi 0, %s82
    %s99 = sphi 0, %s83
  $region4: #{conv_batchnorm_relu.2} parent=0 // loop_header_branch
    %11 = sbr.rel (%p9) target = $region8
  $region5: #{conv_batchnorm_relu.2} parent=0 // loop_body
    %s13 = ssub.s32 %s8, 1
    %s14 = ssub.s32 %s8, 2
    %s21 = sadd.s32 1, %s16
    %p22 = scmp.ge.s32.totalorder %s21, 1
    %s23 = scalar_select %p22, 0, %s21
    %s24 = sadd.s32 1, %s15
    %s25 = scalar_select %p22, %s24, %s15
    %p26 = scmp.ge.s32.totalorder %s25, 2
    %s27 = scalar_select %p26, 0, %s25
    %s28 = sadd.s32 %s15, %s16
    %s29 = sadd.s32 %s27, %s23
    %s30 = ssub.s32 %s28, %s29
    %p31 = scmp.eq.s32.totalorder %s30, 0
    %s33 = sadd.s32 %s32, 1
    %s34 = scalar_select %p31, %s32, %s33
    %p37 = pneg %p31
    %p38 = scmp.eq.s32.totalorder %s8, 1
    %p39 = por %p37, %p38
    %p40 = scmp.ne.s32.totalorder %s32, %s35
    %p41 = scmp.eq.s32.totalorder %s8, 0
    %p42 = por %p40, %p41
    %p43 = scmp.ne.s32.totalorder %s32, %s35
    %p44 = scmp.eq.s32.totalorder %s13, 1
    %p45 = por %p43, %p44
    %p46 = scmp.ne.s32.totalorder %s35, %s36
    %p47 = scmp.eq.s32.totalorder %s13, 0
    %p48 = por %p46, %p47
    %p49 = scmp.ne.s32.totalorder %s35, %s36
    %p50 = scmp.eq.s32.totalorder %s14, 1
    %p51 = por %p49, %p50
    %p53 = scmp.ne.s32.totalorder %s36, %s52
    %p54 = scmp.eq.s32.totalorder %s14, 0
    %p55 = por %p53, %p54
    %s57 = sadd.s32 %s56, 1
    %p60 = scmp.eq.s32.totalorder %s8, 1
    %p61 = scmp.ne.s32.totalorder %s56, %s58
    %p62 = scmp.eq.s32.totalorder %s8, 0
    %p63 = por %p61, %p62
    %p64 = scmp.ne.s32.totalorder %s56, %s58
    %p65 = scmp.eq.s32.totalorder %s13, 1
    %p66 = por %p64, %p65
    %p67 = scmp.ne.s32.totalorder %s58, %s59
    %p68 = scmp.eq.s32.totalorder %s13, 0
    %p69 = por %p67, %p68
    %p70 = scmp.ne.s32.totalorder %s58, %s59
    %p71 = scmp.eq.s32.totalorder %s14, 1
    %p72 = por %p70, %p71
    %p74 = scmp.ne.s32.totalorder %s59, %s73
    %p75 = scmp.eq.s32.totalorder %s14, 0
    %p76 = por %p74, %p75
    %s77 = ssub.s32 %s15, %s27
    %p78 = scmp.eq.s32.totalorder %s77, 0
    %s80 = sadd.s32 %s79, 1
    %s81 = scalar_select %p78, %s79, %s80
    %p84 = pneg %p78
    %p85 = scmp.eq.s32.totalorder %s8, 1
    %p86 = por %p84, %p85
    %p87 = scmp.ne.s32.totalorder %s79, %s82
    %p88 = scmp.eq.s32.totalorder %s8, 0
    %p89 = por %p87, %p88
    %p90 = scmp.ne.s32.totalorder %s79, %s82
    %p91 = scmp.eq.s32.totalorder %s13, 1
    %p92 = por %p90, %p91
    %p93 = scmp.ne.s32.totalorder %s82, %s83
    %p94 = scmp.eq.s32.totalorder %s13, 0
    %p95 = por %p93, %p94
    %p96 = scmp.ne.s32.totalorder %s82, %s83
    %p97 = scmp.eq.s32.totalorder %s14, 1
    %p98 = por %p96, %p97
    %p100 = scmp.ne.s32.totalorder %s83, %s99
    %p101 = scmp.eq.s32.totalorder %s14, 0
    %p102 = por %p100, %p101
    %p103 = scmp.le.s32.totalorder 1, %s8
    %p104 = scmp.lt.s32.totalorder %s8, 3
    %p105 = pnand %p103, %p104
    %p106 = pneg %p105
    // Predicated region
    $region9: #{conv_batchnorm_relu.2} parent=5 // pred_check
      _
    $region10: #{conv_batchnorm_relu.2} parent=5 // pred_check_branch
      %108 = sbr.rel (%p105) target = $region12
    $region11: #{conv_batchnorm_relu.2} parent=5 // pred_region
      %s109 = ssub.s32 %s8, 1
      // Predicated region
      $region13: #{conv_batchnorm_relu.2} parent=11 // pred_check
        %p110 = pneg %p69
      $region14: #{conv_batchnorm_relu.2} parent=11 // pred_check_branch
        %112 = sbr.rel (%p110) target = $region16
      $region15: #{conv_batchnorm_relu.2} parent=11 // pred_region
        _
      $region16: #{conv_batchnorm_relu.2} parent=11 // pred_fallthru
        _
    $region12: #{conv_batchnorm_relu.2} parent=5 // pred_fallthru
      _
    %p113 = scmp.lt.s32.totalorder %s8, 2
    // Predicated region
    $region17: #{conv_batchnorm_relu.2} parent=5 // pred_check
      %p114 = pneg %p113
    $region18: #{conv_batchnorm_relu.2} parent=5 // pred_check_branch
      %116 = sbr.rel (%p114) target = $region20
    $region19: #{conv_batchnorm_relu.2} parent=5 // pred_region
      // Predicated region
      $region21: #{conv_batchnorm_relu.2} parent=19 // pred_check
        %p117 = pneg %p42
      $region22: #{conv_batchnorm_relu.2} parent=19 // pred_check_branch
        %119 = sbr.rel (%p117) target = $region24
      $region23: #{conv_batchnorm_relu.2} parent=19 // pred_region
        %s120 = sadd.s32 %s15, %s16
        %s121 = smul.u32 64, %s120
        %p122 = scmp.lt.s32.totalorder %s121, 127
        %s123 = scalar_select %p122, %s121, 127
        %s124 = smul.addr %s123, 8
        %s125 = scalar_lea.vmem %s0, %s124
        %s126 = sadd.s32 %s15, %s16
        %s127 = smul.u32 64, %s126
      $region24: #{conv_batchnorm_relu.2} parent=19 // pred_fallthru
        _
    $region20: #{conv_batchnorm_relu.2} parent=5 // pred_fallthru
      _
    %p128 = scmp.le.s32.totalorder 1, %s8
    %p129 = scmp.lt.s32.totalorder %s8, 3
    %p130 = pnand %p128, %p129
    %p131 = pneg %p130
    // Predicated region
    $region25: #{conv_batchnorm_relu.2} parent=5 // pred_check
      _
    $region26: #{conv_batchnorm_relu.2} parent=5 // pred_check_branch
      %133 = sbr.rel (%p130) target = $region28
    $region27: #{conv_batchnorm_relu.2} parent=5 // pred_region
      %s134 = ssub.s32 %s8, 1
      %s135 = sadd.s32 %s17, %s18
      %s136 = smul.u32 64, %s135
      %p137 = scmp.lt.s32.totalorder %s136, 127
      %s138 = scalar_select %p137, %s136, 127
      %s139 = smul.addr %s138, 8
      %s140 = scalar_lea.vmem %s0, %s139
      %p141 = pneg %p48
      %p142 = pneg %p45
      %p143 = pneg %p69
      %p144 = pneg %p66
      %p145 = pneg %p95
      %p146 = pneg %p92
      %p147 = scmp.lt.s32.totalorder %s17, 1
      %s148 = scalar_select %p147, %s17, 1
      %s149 = smul.addr %s148, 8
      %s150 = scalar_lea.vmem %s2, %s149
      %s151 = sadd.s32 %s17, %s18
      %s152 = smul.u32 64, %s151
      %p153 = scmp.lt.s32.totalorder %s152, 127
      %s154 = scalar_select %p153, %s152, 127
      %s155 = smul.addr %s154, 8
      %s156 = scalar_lea.vmem %s0, %s155
      %s157 = sadd.s32 %s17, %s18
      %s158 = smul.u32 64, %s157
      %p159 = scmp.lt.s32.totalorder %s17, 1
      %s160 = scalar_select %p159, %s17, 1
      %s161 = smul.addr %s160, 8
      %s162 = scalar_lea.vmem %s2, %s161
      %p163 = scmp.eq.s32.totalorder %s18, 0
      // Predicated region
      $region29: #{conv_batchnorm_relu.2} parent=27 // pred_check
        %p164 = pneg %p163
      $region30: #{conv_batchnorm_relu.2} parent=27 // pred_check_branch
        %166 = sbr.rel (%p164) target = $region32
      $region31: #{conv_batchnorm_relu.2} parent=27 // pred_region
        %167 = vst [vmem:[%s162] sm:$0xff] 0.0
      $region32: #{conv_batchnorm_relu.2} parent=27 // pred_fallthru
        _
      %v168 = vld [vmem:[%s156] sm:$0xff]
      %v169 = vld [vmem:[%s156 + $0x8] sm:$0xff]
      %v170 = vld [vmem:[%s156 + $0x10] sm:$0xff]
      %v171 = vld [vmem:[%s156 + $0x18] sm:$0xff]
      %v172 = vld [vmem:[%s156 + $0x20] sm:$0xff]
      %v173 = vld [vmem:[%s156 + $0x28] sm:$0xff]
      %v174 = vld [vmem:[%s156 + $0x30] sm:$0xff]
      %v175 = vld [vmem:[%s156 + $0x38] sm:$0xff]
      %v176 = vld [vmem:[%s156 + $0x40] sm:$0xff]
      %v177 = vld [vmem:[%s156 + $0x48] sm:$0xff]
      %v178 = vld [vmem:[%s156 + $0x50] sm:$0xff]
      %v179 = vld [vmem:[%s156 + $0x58] sm:$0xff]
      %v180 = vld [vmem:[%s156 + $0x60] sm:$0xff]
      %v181 = vld [vmem:[%s156 + $0x68] sm:$0xff]
      %v182 = vld [vmem:[%s156 + $0x70] sm:$0xff]
      %v183 = vld [vmem:[%s156 + $0x78] sm:$0xff]
      %v184 = vld [vmem:[%s156 + $0x80] sm:$0xff]
      %v185 = vld [vmem:[%s156 + $0x88] sm:$0xff]
      %v186 = vld [vmem:[%s156 + $0x90] sm:$0xff]
      %v187 = vld [vmem:[%s156 + $0x98] sm:$0xff]
      %v188 = vld [vmem:[%s156 + $0xa0] sm:$0xff]
      %v189 = vld [vmem:[%s156 + $0xa8] sm:$0xff]
      %v190 = vld [vmem:[%s156 + $0xb0] sm:$0xff]
      %v191 = vld [vmem:[%s156 + $0xb8] sm:$0xff]
      %v192 = vld [vmem:[%s156 + $0xc0] sm:$0xff]
      %v193 = vld [vmem:[%s156 + $0xc8] sm:$0xff]
      %v194 = vld [vmem:[%s156 + $0xd0] sm:$0xff]
      %v195 = vld [vmem:[%s156 + $0xd8] sm:$0xff]
      %v196 = vld [vmem:[%s156 + $0xe0] sm:$0xff]
      %v197 = vld [vmem:[%s156 + $0xe8] sm:$0xff]
      %v198 = vld [vmem:[%s156 + $0xf0] sm:$0xff]
      %v199 = vld [vmem:[%s156 + $0xf8] sm:$0xff]
      %v200 = vld [vmem:[%s156 + $0x100] sm:$0xff]
      %v201 = vld [vmem:[%s156 + $0x108] sm:$0xff]
      %v202 = vld [vmem:[%s156 + $0x110] sm:$0xff]
      %v203 = vld [vmem:[%s156 + $0x118] sm:$0xff]
      %v204 = vld [vmem:[%s156 + $0x120] sm:$0xff]
      %v205 = vld [vmem:[%s156 + $0x128] sm:$0xff]
      %v206 = vld [vmem:[%s156 + $0x130] sm:$0xff]
      %v207 = vld [vmem:[%s156 + $0x138] sm:$0xff]
      %v208 = vld [vmem:[%s156 + $0x140] sm:$0xff]
      %v209 = vld [vmem:[%s156 + $0x148] sm:$0xff]
      %v210 = vld [vmem:[%s156 + $0x150] sm:$0xff]
      %v211 = vld [vmem:[%s156 + $0x158] sm:$0xff]
      %v212 = vld [vmem:[%s156 + $0x160] sm:$0xff]
      %v213 = vld [vmem:[%s156 + $0x168] sm:$0xff]
      %v214 = vld [vmem:[%s156 + $0x170] sm:$0xff]
      %v215 = vld [vmem:[%s156 + $0x178] sm:$0xff]
      %v216 = vld [vmem:[%s156 + $0x180] sm:$0xff]
      %v217 = vld [vmem:[%s156 + $0x188] sm:$0xff]
      %v218 = vld [vmem:[%s156 + $0x190] sm:$0xff]
      %v219 = vld [vmem:[%s156 + $0x198] sm:$0xff]
      %v220 = vld [vmem:[%s156 + $0x1a0] sm:$0xff]
      %v221 = vld [vmem:[%s156 + $0x1a8] sm:$0xff]
      %v222 = vld [vmem:[%s156 + $0x1b0] sm:$0xff]
      %v223 = vld [vmem:[%s156 + $0x1b8] sm:$0xff]
      %v224 = vld [vmem:[%s156 + $0x1c0] sm:$0xff]
      %v225 = vld [vmem:[%s156 + $0x1c8] sm:$0xff]
      %v226 = vld [vmem:[%s156 + $0x1d0] sm:$0xff]
      %v227 = vld [vmem:[%s156 + $0x1d8] sm:$0xff]
      %v228 = vld [vmem:[%s156 + $0x1e0] sm:$0xff]
      %v229 = vld [vmem:[%s156 + $0x1e8] sm:$0xff]
      %v230 = vld [vmem:[%s156 + $0x1f0] sm:$0xff]
      %v231 = vld [vmem:[%s156 + $0x1f8] sm:$0xff]
      %v232 = vld [vmem:[%s1] sm:$0xff]
      %v233 = vld [vmem:[%s1 + $0x8] sm:$0xff]
      %v234 = vld [vmem:[%s1 + $0x10] sm:$0xff]
      %v235 = vld [vmem:[%s1 + $0x18] sm:$0xff]
      %v236 = vld [vmem:[%s1 + $0x20] sm:$0xff]
      %v237 = vld [vmem:[%s1 + $0x28] sm:$0xff]
      %v238 = vld [vmem:[%s1 + $0x30] sm:$0xff]
      %v239 = vld [vmem:[%s1 + $0x38] sm:$0xff]
      %v240 = vld [vmem:[%s1 + $0x40] sm:$0xff]
      %v241 = vld [vmem:[%s1 + $0x48] sm:$0xff]
      %v242 = vld [vmem:[%s1 + $0x50] sm:$0xff]
      %v243 = vld [vmem:[%s1 + $0x58] sm:$0xff]
      %v244 = vld [vmem:[%s1 + $0x60] sm:$0xff]
      %v245 = vld [vmem:[%s1 + $0x68] sm:$0xff]
      %v246 = vld [vmem:[%s1 + $0x70] sm:$0xff]
      %v247 = vld [vmem:[%s1 + $0x78] sm:$0xff]
      %248 = vmatprep.subr.mxu0 0.0
      %249 = vmatpush1.msra.mxu0 %v232
      %250 = vmatprep.subr.mxu0 0.0
      %251 = vmatpush1.msra.mxu0 %v233
      %252 = vmatprep.subr.mxu0 0.0
      %253 = vmatpush1.msra.mxu0 %v234
      %254 = vmatprep.subr.mxu0 0.0
      %255 = vmatpush1.msra.mxu0 %v235
      %256 = vmatprep.subr.mxu0 0.0
      %257 = vmatpush1.msra.mxu0 %v236
      %258 = vmatprep.subr.mxu0 0.0
      %259 = vmatpush1.msra.mxu0 %v237
      %260 = vmatprep.subr.mxu0 0.0
      %261 = vmatpush1.msra.mxu0 %v238
      %262 = vmatprep.subr.mxu0 0.0
      %263 = vmatpush1.msra.mxu0 %v239
      %264 = vmatprep.subr.mxu0 0.0
      %265 = vmatpush1.msra.mxu0 %v240
      %266 = vmatprep.subr.mxu0 0.0
      %267 = vmatpush1.msra.mxu0 %v241
      %268 = vmatprep.subr.mxu0 0.0
      %269 = vmatpush1.msra.mxu0 %v242
      %270 = vmatprep.subr.mxu0 0.0
      %271 = vmatpush1.msra.mxu0 %v243
      %272 = vmatprep.subr.mxu0 0.0
      %273 = vmatpush1.msra.mxu0 %v244
      %274 = vmatprep.subr.mxu0 0.0
      %275 = vmatpush1.msra.mxu0 %v245
      %276 = vmatprep.subr.mxu0 0.0
      %277 = vmatpush1.msra.mxu0 %v246
      %278 = vmatprep.subr.mxu0 0.0
      %279 = vmatpush1.msra.mxu0 %v247
      %280 = vmatprep.subr.mxu0 0.0
      %281 = vmatpush1.msra.mxu0 0.0
      %282 = vmatprep.subr.mxu0 0.0
      %283 = vmatpush1.msra.mxu0 0.0
      %284 = vmatprep.subr.mxu0 0.0
      %285 = vmatpush1.msra.mxu0 0.0
      %286 = vmatprep.subr.mxu0 0.0
      %287 = vmatpush1.msra.mxu0 0.0
      %288 = vmatprep.subr.mxu0 0.0
      %289 = vmatpush1.msra.mxu0 0.0
      %290 = vmatprep.subr.mxu0 0.0
      %291 = vmatpush1.msra.mxu0 0.0
      %292 = vmatprep.subr.mxu0 0.0
      %293 = vmatpush1.msra.mxu0 0.0
      %294 = vmatprep.subr.mxu0 0.0
      %295 = vmatpush1.msra.mxu0 0.0
      %296 = vmatprep.subr.mxu0 0.0
      %297 = vmatpush1.msra.mxu0 0.0
      %298 = vmatprep.subr.mxu0 0.0
      %299 = vmatpush1.msra.mxu0 0.0
      %300 = vmatprep.subr.mxu0 0.0
      %301 = vmatpush1.msra.mxu0 0.0
      %302 = vmatprep.subr.mxu0 0.0
      %303 = vmatpush1.msra.mxu0 0.0
      %304 = vmatprep.subr.mxu0 0.0
      %305 = vmatpush1.msra.mxu0 0.0
      %306 = vmatprep.subr.mxu0 0.0
      %307 = vmatpush1.msra.mxu0 0.0
      %308 = vmatprep.subr.mxu0 0.0
      %309 = vmatpush1.msra.mxu0 0.0
      %310 = vmatprep.subr.mxu0 0.0
      %311 = vmatpush1.msra.mxu0 0.0
      %312 = vmatprep.mubr.f32.mxu0 0.0
      %313 = vmatmul.mubr.f32.gmra.mrb[0].mxu0 %v168
      %v314 = vpop.f32.mrb[0].mxu0
      %v315 = vadd.f32 0.0, %v314
      %v316 = vpop.f32.mrb[0].mxu0
      %317 = vmatprep.mubr.f32.mxu0 0.0
      %318 = vmatmul.mubr.f32.gmra.mrb[0].mxu0 %v169
      %v319 = vpop.f32.mrb[0].mxu0
      %v320 = vadd.f32 0.0, %v319
      %v321 = vpop.f32.mrb[0].mxu0
      %322 = vmatprep.mubr.f32.mxu0 0.0
      %323 = vmatmul.mubr.f32.gmra.mrb[0].mxu0 %v170
      %v324 = vpop.f32.mrb[0].mxu0
      %v325 = vadd.f32 0.0, %v324
      %v326 = vpop.f32.mrb[0].mxu0
      %327 = vmatprep.mubr.f32.mxu0 0.0
      %328 = vmatmul.mubr.f32.gmra.mrb[0].mxu0 %v171
      %v329 = vpop.f32.mrb[0].mxu0
      %v330 = vadd.f32 0.0, %v329
      %v331 = vpop.f32.mrb[0].mxu0
      %332 = vmatprep.mubr.f32.mxu0 0.0
      %333 = vmatmul.mubr.f32.gmra.mrb[0].mxu0 %v172
      %v334 = vpop.f32.mrb[0].mxu0
      %v335 = vadd.f32 0.0, %v334
      %v336 = vpop.f32.mrb[0].mxu0
      %337 = vmatprep.mubr.f32.mxu0 0.0
      %338 = vmatmul.mubr.f32.gmra.mrb[0].mxu0 %v173
      %v339 = vpop.f32.mrb[0].mxu0
      %v340 = vadd.f32 0.0, %v339
      %v341 = vpop.f32.mrb[0].mxu0
      %342 = vmatprep.mubr.f32.mxu0 0.0
      %343 = vmatmul.mubr.f32.gmra.mrb[0].mxu0 %v174
      %v344 = vpop.f32.mrb[0].mxu0
      %v345 = vadd.f32 0.0, %v344
      %v346 = vpop.f32.mrb[0].mxu0
      %347 = vmatprep.mubr.f32.mxu0 0.0
      %348 = vmatmul.mubr.f32.gmra.mrb[0].mxu0 %v175
      %v349 = vpop.f32.mrb[0].mxu0
      %v350 = vadd.f32 0.0, %v349
      %v351 = vpop.f32.mrb[0].mxu0
      %352 = vmatprep.mubr.f32.mxu0 0.0
      %353 = vmatmul.mubr.f32.gmra.mrb[0].mxu0 %v176
      %v354 = vpop.f32.mrb[0].mxu0
      %v355 = vadd.f32 0.0, %v354
      %v356 = vpop.f32.mrb[0].mxu0
      %357 = vmatprep.mubr.f32.mxu0 0.0
      %358 = vmatmul.mubr.f32.gmra.mrb[0].mxu0 %v177
      %v359 = vpop.f32.mrb[0].mxu0
      %v360 = vadd.f32 0.0, %v359
      %v361 = vpop.f32.mrb[0].mxu0
      %362 = vmatprep.mubr.f32.mxu0 0.0
      %363 = vmatmul.mubr.f32.gmra.mrb[0].mxu0 %v178
      %v364 = vpop.f32.mrb[0].mxu0
      %v365 = vadd.f32 0.0, %v364
      %v366 = vpop.f32.mrb[0].mxu0
      %367 = vmatprep.mubr.f32.mxu0 0.0
      %368 = vmatmul.mubr.f32.gmra.mrb[0].mxu0 %v179
      %v369 = vpop.f32.mrb[0].mxu0
      %v370 = vadd.f32 0.0, %v369
      %v371 = vpop.f32.mrb[0].mxu0
      %372 = vmatprep.mubr.f32.mxu0 0.0
      %373 = vmatmul.mubr.f32.gmra.mrb[0].mxu0 %v180
      %v374 = vpop.f32.mrb[0].mxu0
      %v375 = vadd.f32 0.0, %v374
      %v376 = vpop.f32.mrb[0].mxu0
      %377 = vmatprep.mubr.f32.mxu0 0.0
      %378 = vmatmul.mubr.f32.gmra.mrb[0].mxu0 %v181
      %v379 = vpop.f32.mrb[0].mxu0
      %v380 = vadd.f32 0.0, %v379
      %v381 = vpop.f32.mrb[0].mxu0
      %382 = vmatprep.mubr.f32.mxu0 0.0
      %383 = vmatmul.mubr.f32.gmra.mrb[0].mxu0 %v182
      %v384 = vpop.f32.mrb[0].mxu0
      %v385 = vadd.f32 0.0, %v384
      %v386 = vpop.f32.mrb[0].mxu0
      %387 = vmatprep.mubr.f32.mxu0 0.0
      %388 = vmatmul.mubr.f32.gmra.mrb[0].mxu0 %v183
      %v389 = vpop.f32.mrb[0].mxu0
      %v390 = vadd.f32 0.0, %v389
      %v391 = vpop.f32.mrb[0].mxu0
      %392 = vmatprep.mubr.f32.mxu0 0.0
      %393 = vmatmul.mubr.f32.gmra.mrb[0].mxu0 %v184
      %v394 = vpop.f32.mrb[0].mxu0
      %v395 = vadd.f32 0.0, %v394
      %v396 = vpop.f32.mrb[0].mxu0
      %397 = vmatprep.mubr.f32.mxu0 0.0
      %398 = vmatmul.mubr.f32.gmra.mrb[0].mxu0 %v185
      %v399 = vpop.f32.mrb[0].mxu0
      %v400 = vadd.f32 0.0, %v399
      %v401 = vpop.f32.mrb[0].mxu0
      %402 = vmatprep.mubr.f32.mxu0 0.0
      %403 = vmatmul.mubr.f32.gmra.mrb[0].mxu0 %v186
      %v404 = vpop.f32.mrb[0].mxu0
      %v405 = vadd.f32 0.0, %v404
      %v406 = vpop.f32.mrb[0].mxu0
      %407 = vmatprep.mubr.f32.mxu0 0.0
      %408 = vmatmul.mubr.f32.gmra.mrb[0].mxu0 %v187
      %v409 = vpop.f32.mrb[0].mxu0
      %v410 = vadd.f32 0.0, %v409
      %v411 = vpop.f32.mrb[0].mxu0
      %412 = vmatprep.mubr.f32.mxu0 0.0
      %413 = vmatmul.mubr.f32.gmra.mrb[0].mxu0 %v188
      %v414 = vpop.f32.mrb[0].mxu0
      %v415 = vadd.f32 0.0, %v414
      %v416 = vpop.f32.mrb[0].mxu0
      %417 = vmatprep.mubr.f32.mxu0 0.0
      %418 = vmatmul.mubr.f32.gmra.mrb[0].mxu0 %v189
      %v419 = vpop.f32.mrb[0].mxu0
      %v420 = vadd.f32 0.0, %v419
      %v421 = vpop.f32.mrb[0].mxu0
      %422 = vmatprep.mubr.f32.mxu0 0.0
      %423 = vmatmul.mubr.f32.gmra.mrb[0].mxu0 %v190
      %v424 = vpop.f32.mrb[0].mxu0
      %v425 = vadd.f32 0.0, %v424
      %v426 = vpop.f32.mrb[0].mxu0
      %427 = vmatprep.mubr.f32.mxu0 0.0
      %428 = vmatmul.mubr.f32.gmra.mrb[0].mxu0 %v191
      %v429 = vpop.f32.mrb[0].mxu0
      %v430 = vadd.f32 0.0, %v429
      %v431 = vpop.f32.mrb[0].mxu0
      %432 = vmatprep.mubr.f32.mxu0 0.0
      %433 = vmatmul.mubr.f32.gmra.mrb[0].mxu0 %v192
      %v434 = vpop.f32.mrb[0].mxu0
      %v435 = vadd.f32 0.0, %v434
      %v436 = vpop.f32.mrb[0].mxu0
      %437 = vmatprep.mubr.f32.mxu0 0.0
      %438 = vmatmul.mubr.f32.gmra.mrb[0].mxu0 %v193
      %v439 = vpop.f32.mrb[0].mxu0
      %v440 = vadd.f32 0.0, %v439
      %v441 = vpop.f32.mrb[0].mxu0
      %442 = vmatprep.mubr.f32.mxu0 0.0
      %443 = vmatmul.mubr.f32.gmra.mrb[0].mxu0 %v194
      %v444 = vpop.f32.mrb[0].mxu0
      %v445 = vadd.f32 0.0, %v444
      %v446 = vpop.f32.mrb[0].mxu0
      %447 = vmatprep.mubr.f32.mxu0 0.0
      %448 = vmatmul.mubr.f32.gmra.mrb[0].mxu0 %v195
      %v449 = vpop.f32.mrb[0].mxu0
      %v450 = vadd.f32 0.0, %v449
      %v451 = vpop.f32.mrb[0].mxu0
      %452 = vmatprep.mubr.f32.mxu0 0.0
      %453 = vmatmul.mubr.f32.gmra.mrb[0].mxu0 %v196
      %v454 = vpop.f32.mrb[0].mxu0
      %v455 = vadd.f32 0.0, %v454
      %v456 = vpop.f32.mrb[0].mxu0
      %457 = vmatprep.mubr.f32.mxu0 0.0
      %458 = vmatmul.mubr.f32.gmra.mrb[0].mxu0 %v197
      %v459 = vpop.f32.mrb[0].mxu0
      %v460 = vadd.f32 0.0, %v459
      %v461 = vpop.f32.mrb[0].mxu0
      %462 = vmatprep.mubr.f32.mxu0 0.0
      %463 = vmatmul.mubr.f32.gmra.mrb[0].mxu0 %v198
      %v464 = vpop.f32.mrb[0].mxu0
      %v465 = vadd.f32 0.0, %v464
      %v466 = vpop.f32.mrb[0].mxu0
      %467 = vmatprep.mubr.f32.mxu0 0.0
      %468 = vmatmul.mubr.f32.gmra.mrb[0].mxu0 %v199
      %v469 = vpop.f32.mrb[0].mxu0
      %v470 = vadd.f32 0.0, %v469
      %v471 = vpop.f32.mrb[0].mxu0
      %472 = vmatprep.mubr.f32.mxu0 0.0
      %473 = vmatmul.mubr.f32.gmra.mrb[0].mxu0 %v200
      %v474 = vpop.f32.mrb[0].mxu0
      %v475 = vadd.f32 0.0, %v474
      %v476 = vpop.f32.mrb[0].mxu0
      %477 = vmatprep.mubr.f32.mxu0 0.0
      %478 = vmatmul.mubr.f32.gmra.mrb[0].mxu0 %v201
      %v479 = vpop.f32.mrb[0].mxu0
      %v480 = vadd.f32 0.0, %v479
      %v481 = vpop.f32.mrb[0].mxu0
      %482 = vmatprep.mubr.f32.mxu0 0.0
      %483 = vmatmul.mubr.f32.gmra.mrb[0].mxu0 %v202
      %v484 = vpop.f32.mrb[0].mxu0
      %v485 = vadd.f32 0.0, %v484
      %v486 = vpop.f32.mrb[0].mxu0
      %487 = vmatprep.mubr.f32.mxu0 0.0
      %488 = vmatmul.mubr.f32.gmra.mrb[0].mxu0 %v203
      %v489 = vpop.f32.mrb[0].mxu0
      %v490 = vadd.f32 0.0, %v489
      %v491 = vpop.f32.mrb[0].mxu0
      %492 = vmatprep.mubr.f32.mxu0 0.0
      %493 = vmatmul.mubr.f32.gmra.mrb[0].mxu0 %v204
      %v494 = vpop.f32.mrb[0].mxu0
      %v495 = vadd.f32 0.0, %v494
      %v496 = vpop.f32.mrb[0].mxu0
      %497 = vmatprep.mubr.f32.mxu0 0.0
      %498 = vmatmul.mubr.f32.gmra.mrb[0].mxu0 %v205
      %v499 = vpop.f32.mrb[0].mxu0
      %v500 = vadd.f32 0.0, %v499
      %v501 = vpop.f32.mrb[0].mxu0
      %502 = vmatprep.mubr.f32.mxu0 0.0
      %503 = vmatmul.mubr.f32.gmra.mrb[0].mxu0 %v206
      %v504 = vpop.f32.mrb[0].mxu0
      %v505 = vadd.f32 0.0, %v504
      %v506 = vpop.f32.mrb[0].mxu0
      %507 = vmatprep.mubr.f32.mxu0 0.0
      %508 = vmatmul.mubr.f32.gmra.mrb[0].mxu0 %v207
      %v509 = vpop.f32.mrb[0].mxu0
      %v510 = vadd.f32 0.0, %v509
      %v511 = vpop.f32.mrb[0].mxu0
      %512 = vmatprep.mubr.f32.mxu0 0.0
      %513 = vmatmul.mubr.f32.gmra.mrb[0].mxu0 %v208
      %v514 = vpop.f32.mrb[0].mxu0
      %v515 = vadd.f32 0.0, %v514
      %v516 = vpop.f32.mrb[0].mxu0
      %517 = vmatprep.mubr.f32.mxu0 0.0
      %518 = vmatmul.mubr.f32.gmra.mrb[0].mxu0 %v209
      %v519 = vpop.f32.mrb[0].mxu0
      %v520 = vadd.f32 0.0, %v519
      %v521 = vpop.f32.mrb[0].mxu0
      %522 = vmatprep.mubr.f32.mxu0 0.0
      %523 = vmatmul.mubr.f32.gmra.mrb[0].mxu0 %v210
      %v524 = vpop.f32.mrb[0].mxu0
      %v525 = vadd.f32 0.0, %v524
      %v526 = vpop.f32.mrb[0].mxu0
      %527 = vmatprep.mubr.f32.mxu0 0.0
      %528 = vmatmul.mubr.f32.gmra.mrb[0].mxu0 %v211
      %v529 = vpop.f32.mrb[0].mxu0
      %v530 = vadd.f32 0.0, %v529
      %v531 = vpop.f32.mrb[0].mxu0
      %532 = vmatprep.mubr.f32.mxu0 0.0
      %533 = vmatmul.mubr.f32.gmra.mrb[0].mxu0 %v212
      %v534 = vpop.f32.mrb[0].mxu0
      %v535 = vadd.f32 0.0, %v534
      %v536 = vpop.f32.mrb[0].mxu0
      %537 = vmatprep.mubr.f32.mxu0 0.0
      %538 = vmatmul.mubr.f32.gmra.mrb[0].mxu0 %v213
      %v539 = vpop.f32.mrb[0].mxu0
      %v540 = vadd.f32 0.0, %v539
      %v541 = vpop.f32.mrb[0].mxu0
      %542 = vmatprep.mubr.f32.mxu0 0.0
      %543 = vmatmul.mubr.f32.gmra.mrb[0].mxu0 %v214
      %v544 = vpop.f32.mrb[0].mxu0
      %v545 = vadd.f32 0.0, %v544
      %v546 = vpop.f32.mrb[0].mxu0
      %547 = vmatprep.mubr.f32.mxu0 0.0
      %548 = vmatmul.mubr.f32.gmra.mrb[0].mxu0 %v215
      %v549 = vpop.f32.mrb[0].mxu0
      %v550 = vadd.f32 0.0, %v549
      %v551 = vpop.f32.mrb[0].mxu0
      %552 = vmatprep.mubr.f32.mxu0 0.0
      %553 = vmatmul.mubr.f32.gmra.mrb[0].mxu0 %v216
      %v554 = vpop.f32.mrb[0].mxu0
      %v555 = vadd.f32 0.0, %v554
      %v556 = vpop.f32.mrb[0].mxu0
      %557 = vmatprep.mubr.f32.mxu0 0.0
      %558 = vmatmul.mubr.f32.gmra.mrb[0].mxu0 %v217
      %v559 = vpop.f32.mrb[0].mxu0
      %v560 = vadd.f32 0.0, %v559
      %v561 = vpop.f32.mrb[0].mxu0
      %562 = vmatprep.mubr.f32.mxu0 0.0
      %563 = vmatmul.mubr.f32.gmra.mrb[0].mxu0 %v218
      %v564 = vpop.f32.mrb[0].mxu0
      %v565 = vadd.f32 0.0, %v564
      %v566 = vpop.f32.mrb[0].mxu0
      %567 = vmatprep.mubr.f32.mxu0 0.0
      %568 = vmatmul.mubr.f32.gmra.mrb[0].mxu0 %v219
      %v569 = vpop.f32.mrb[0].mxu0
      %v570 = vadd.f32 0.0, %v569
      %v571 = vpop.f32.mrb[0].mxu0
      %572 = vmatprep.mubr.f32.mxu0 0.0
      %573 = vmatmul.mubr.f32.gmra.mrb[0].mxu0 %v220
      %v574 = vpop.f32.mrb[0].mxu0
      %v575 = vadd.f32 0.0, %v574
      %v576 = vpop.f32.mrb[0].mxu0
      %577 = vmatprep.mubr.f32.mxu0 0.0
      %578 = vmatmul.mubr.f32.gmra.mrb[0].mxu0 %v221
      %v579 = vpop.f32.mrb[0].mxu0
      %v580 = vadd.f32 0.0, %v579
      %v581 = vpop.f32.mrb[0].mxu0
      %582 = vmatprep.mubr.f32.mxu0 0.0
      %583 = vmatmul.mubr.f32.gmra.mrb[0].mxu0 %v222
      %v584 = vpop.f32.mrb[0].mxu0
      %v585 = vadd.f32 0.0, %v584
      %v586 = vpop.f32.mrb[0].mxu0
      %587 = vmatprep.mubr.f32.mxu0 0.0
      %588 = vmatmul.mubr.f32.gmra.mrb[0].mxu0 %v223
      %v589 = vpop.f32.mrb[0].mxu0
      %v590 = vadd.f32 0.0, %v589
      %v591 = vpop.f32.mrb[0].mxu0
      %592 = vmatprep.mubr.f32.mxu0 0.0
      %593 = vmatmul.mubr.f32.gmra.mrb[0].mxu0 %v224
      %v594 = vpop.f32.mrb[0].mxu0
      %v595 = vadd.f32 0.0, %v594
      %v596 = vpop.f32.mrb[0].mxu0
      %597 = vmatprep.mubr.f32.mxu0 0.0
      %598 = vmatmul.mubr.f32.gmra.mrb[0].mxu0 %v225
      %v599 = vpop.f32.mrb[0].mxu0
      %v600 = vadd.f32 0.0, %v599
      %v601 = vpop.f32.mrb[0].mxu0
      %602 = vmatprep.mubr.f32.mxu0 0.0
      %603 = vmatmul.mubr.f32.gmra.mrb[0].mxu0 %v226
      %v604 = vpop.f32.mrb[0].mxu0
      %v605 = vadd.f32 0.0, %v604
      %v606 = vpop.f32.mrb[0].mxu0
      %607 = vmatprep.mubr.f32.mxu0 0.0
      %608 = vmatmul.mubr.f32.gmra.mrb[0].mxu0 %v227
      %v609 = vpop.f32.mrb[0].mxu0
      %v610 = vadd.f32 0.0, %v609
      %v611 = vpop.f32.mrb[0].mxu0
      %612 = vmatprep.mubr.f32.mxu0 0.0
      %613 = vmatmul.mubr.f32.gmra.mrb[0].mxu0 %v228
      %v614 = vpop.f32.mrb[0].mxu0
      %v615 = vadd.f32 0.0, %v614
      %v616 = vpop.f32.mrb[0].mxu0
      %617 = vmatprep.mubr.f32.mxu0 0.0
      %618 = vmatmul.mubr.f32.gmra.mrb[0].mxu0 %v229
      %v619 = vpop.f32.mrb[0].mxu0
      %v620 = vadd.f32 0.0, %v619
      %v621 = vpop.f32.mrb[0].mxu0
      %622 = vmatprep.mubr.f32.mxu0 0.0
      %623 = vmatmul.mubr.f32.gmra.mrb[0].mxu0 %v230
      %v624 = vpop.f32.mrb[0].mxu0
      %v625 = vadd.f32 0.0, %v624
      %v626 = vpop.f32.mrb[0].mxu0
      %627 = vmatprep.mubr.f32.mxu0 0.0
      %628 = vmatmul.mubr.f32.gmra.mrb[0].mxu0 %v231
      %v629 = vpop.f32.mrb[0].mxu0
      %v630 = vadd.f32 0.0, %v629
      %v631 = vpop.f32.mrb[0].mxu0
      %632 = vdwg.mxu0
      %v633 = vld [vmem:[%s162] sm:$0x1]
      %v634 = vadd.f32 %v315, %v320
      %v635 = vadd.f32 %v634, %v325
      %v636 = vadd.f32 %v635, %v330
      %v637 = vadd.f32 %v636, %v335
      %v638 = vadd.f32 %v637, %v340
      %v639 = vadd.f32 %v638, %v345
      %v640 = vadd.f32 %v639, %v350
      %v641 = vadd.f32 %v640, %v355
      %v642 = vadd.f32 %v641, %v360
      %v643 = vadd.f32 %v642, %v365
      %v644 = vadd.f32 %v643, %v370
      %v645 = vadd.f32 %v644, %v375
      %v646 = vadd.f32 %v645, %v380
      %v647 = vadd.f32 %v646, %v385
      %v648 = vadd.f32 %v647, %v390
      %v649 = vadd.f32 %v648, %v395
      %v650 = vadd.f32 %v649, %v400
      %v651 = vadd.f32 %v650, %v405
      %v652 = vadd.f32 %v651, %v410
      %v653 = vadd.f32 %v652, %v415
      %v654 = vadd.f32 %v653, %v420
      %v655 = vadd.f32 %v654, %v425
      %v656 = vadd.f32 %v655, %v430
      %v657 = vadd.f32 %v656, %v435
      %v658 = vadd.f32 %v657, %v440
      %v659 = vadd.f32 %v658, %v445
      %v660 = vadd.f32 %v659, %v450
      %v661 = vadd.f32 %v660, %v455
      %v662 = vadd.f32 %v661, %v460
      %v663 = vadd.f32 %v662, %v465
      %v664 = vadd.f32 %v663, %v470
      %v665 = vadd.f32 %v664, %v475
      %v666 = vadd.f32 %v665, %v480
      %v667 = vadd.f32 %v666, %v485
      %v668 = vadd.f32 %v667, %v490
      %v669 = vadd.f32 %v668, %v495
      %v670 = vadd.f32 %v669, %v500
      %v671 = vadd.f32 %v670, %v505
      %v672 = vadd.f32 %v671, %v510
      %v673 = vadd.f32 %v672, %v515
      %v674 = vadd.f32 %v673, %v520
      %v675 = vadd.f32 %v674, %v525
      %v676 = vadd.f32 %v675, %v530
      %v677 = vadd.f32 %v676, %v535
      %v678 = vadd.f32 %v677, %v540
      %v679 = vadd.f32 %v678, %v545
      %v680 = vadd.f32 %v679, %v550
      %v681 = vadd.f32 %v680, %v555
      %v682 = vadd.f32 %v681, %v560
      %v683 = vadd.f32 %v682, %v565
      %v684 = vadd.f32 %v683, %v570
      %v685 = vadd.f32 %v684, %v575
      %v686 = vadd.f32 %v685, %v580
      %v687 = vadd.f32 %v686, %v585
      %v688 = vadd.f32 %v687, %v590
      %v689 = vadd.f32 %v688, %v595
      %v690 = vadd.f32 %v689, %v600
      %v691 = vadd.f32 %v690, %v605
      %v692 = vadd.f32 %v691, %v610
      %v693 = vadd.f32 %v692, %v615
      %v694 = vadd.f32 %v693, %v620
      %v695 = vadd.f32 %v694, %v625
      %v696 = vadd.f32 %v695, %v630
      %v697 = vrot.slane %v696, 4
      %v698 = vadd.f32 %v696, %v697
      %v699 = vrot.slane %v698, 2
      %v700 = vadd.f32 %v698, %v699
      %v701 = vrot.slane %v700, 1
      %v702 = vadd.f32 %v700, %v701
      %v703 = vadd.f32 %v633, %v702
      %704 = vst [vmem:[%s162] sm:$0x1] %v703
      %v705 = vld [vmem:[%s162 + $0x1] sm:$0x1]
      %v706 = vmul.f32 %v315, %v315
      %v707 = vmul.f32 %v320, %v320
      %v708 = vmul.f32 %v325, %v325
      %v709 = vmul.f32 %v330, %v330
      %v710 = vmul.f32 %v335, %v335
      %v711 = vmul.f32 %v340, %v340
      %v712 = vmul.f32 %v345, %v345
      %v713 = vmul.f32 %v350, %v350
      %v714 = vmul.f32 %v355, %v355
      %v715 = vmul.f32 %v360, %v360
      %v716 = vmul.f32 %v365, %v365
      %v717 = vmul.f32 %v370, %v370
      %v718 = vmul.f32 %v375, %v375
      %v719 = vmul.f32 %v380, %v380
      %v720 = vmul.f32 %v385, %v385
      %v721 = vmul.f32 %v390, %v390
      %v722 = vmul.f32 %v395, %v395
      %v723 = vmul.f32 %v400, %v400
      %v724 = vmul.f32 %v405, %v405
      %v725 = vmul.f32 %v410, %v410
      %v726 = vmul.f32 %v415, %v415
      %v727 = vmul.f32 %v420, %v420
      %v728 = vmul.f32 %v425, %v425
      %v729 = vmul.f32 %v430, %v430
      %v730 = vmul.f32 %v435, %v435
      %v731 = vmul.f32 %v440, %v440
      %v732 = vmul.f32 %v445, %v445
      %v733 = vmul.f32 %v450, %v450
      %v734 = vmul.f32 %v455, %v455
      %v735 = vmul.f32 %v460, %v460
      %v736 = vmul.f32 %v465, %v465
      %v737 = vmul.f32 %v470, %v470
      %v738 = vmul.f32 %v475, %v475
      %v739 = vmul.f32 %v480, %v480
      %v740 = vmul.f32 %v485, %v485
      %v741 = vmul.f32 %v490, %v490
      %v742 = vmul.f32 %v495, %v495
      %v743 = vmul.f32 %v500, %v500
      %v744 = vmul.f32 %v505, %v505
      %v745 = vmul.f32 %v510, %v510
      %v746 = vmul.f32 %v515, %v515
      %v747 = vmul.f32 %v520, %v520
      %v748 = vmul.f32 %v525, %v525
      %v749 = vmul.f32 %v530, %v530
      %v750 = vmul.f32 %v535, %v535
      %v751 = vmul.f32 %v540, %v540
      %v752 = vmul.f32 %v545, %v545
      %v753 = vmul.f32 %v550, %v550
      %v754 = vmul.f32 %v555, %v555
      %v755 = vmul.f32 %v560, %v560
      %v756 = vmul.f32 %v565, %v565
      %v757 = vmul.f32 %v570, %v570
      %v758 = vmul.f32 %v575, %v575
      %v759 = vmul.f32 %v580, %v580
      %v760 = vmul.f32 %v585, %v585
      %v761 = vmul.f32 %v590, %v590
      %v762 = vmul.f32 %v595, %v595
      %v763 = vmul.f32 %v600, %v600
      %v764 = vmul.f32 %v605, %v605
      %v765 = vmul.f32 %v610, %v610
      %v766 = vmul.f32 %v615, %v615
      %v767 = vmul.f32 %v620, %v620
      %v768 = vmul.f32 %v625, %v625
      %v769 = vmul.f32 %v630, %v630
      %v770 = vadd.f32 %v706, %v707
      %v771 = vadd.f32 %v770, %v708
      %v772 = vadd.f32 %v771, %v709
      %v773 = vadd.f32 %v772, %v710
      %v774 = vadd.f32 %v773, %v711
      %v775 = vadd.f32 %v774, %v712
      %v776 = vadd.f32 %v775, %v713
      %v777 = vadd.f32 %v776, %v714
      %v778 = vadd.f32 %v777, %v715
      %v779 = vadd.f32 %v778, %v716
      %v780 = vadd.f32 %v779, %v717
      %v781 = vadd.f32 %v780, %v718
      %v782 = vadd.f32 %v781, %v719
      %v783 = vadd.f32 %v782, %v720
      %v784 = vadd.f32 %v783, %v721
      %v785 = vadd.f32 %v784, %v722
      %v786 = vadd.f32 %v785, %v723
      %v787 = vadd.f32 %v786, %v724
      %v788 = vadd.f32 %v787, %v725
      %v789 = vadd.f32 %v788, %v726
      %v790 = vadd.f32 %v789, %v727
      %v791 = vadd.f32 %v790, %v728
      %v792 = vadd.f32 %v791, %v729
      %v793 = vadd.f32 %v792, %v730
      %v794 = vadd.f32 %v793, %v731
      %v795 = vadd.f32 %v794, %v732
      %v796 = vadd.f32 %v795, %v733
      %v797 = vadd.f32 %v796, %v734
      %v798 = vadd.f32 %v797, %v735
      %v799 = vadd.f32 %v798, %v736
      %v800 = vadd.f32 %v799, %v737
      %v801 = vadd.f32 %v800, %v738
      %v802 = vadd.f32 %v801, %v739
      %v803 = vadd.f32 %v802, %v740
      %v804 = vadd.f32 %v803, %v741
      %v805 = vadd.f32 %v804, %v742
      %v806 = vadd.f32 %v805, %v743
      %v807 = vadd.f32 %v806, %v744
      %v808 = vadd.f32 %v807, %v745
      %v809 = vadd.f32 %v808, %v746
      %v810 = vadd.f32 %v809, %v747
      %v811 = vadd.f32 %v810, %v748
      %v812 = vadd.f32 %v811, %v749
      %v813 = vadd.f32 %v812, %v750
      %v814 = vadd.f32 %v813, %v751
      %v815 = vadd.f32 %v814, %v752
      %v816 = vadd.f32 %v815, %v753
      %v817 = vadd.f32 %v816, %v754
      %v818 = vadd.f32 %v817, %v755
      %v819 = vadd.f32 %v818, %v756
      %v820 = vadd.f32 %v819, %v757
      %v821 = vadd.f32 %v820, %v758
      %v822 = vadd.f32 %v821, %v759
      %v823 = vadd.f32 %v822, %v760
      %v824 = vadd.f32 %v823, %v761
      %v825 = vadd.f32 %v824, %v762
      %v826 = vadd.f32 %v825, %v763
      %v827 = vadd.f32 %v826, %v764
      %v828 = vadd.f32 %v827, %v765
      %v829 = vadd.f32 %v828, %v766
      %v830 = vadd.f32 %v829, %v767
      %v831 = vadd.f32 %v830, %v768
      %v832 = vadd.f32 %v831, %v769
      %v833 = vrot.slane %v832, 4
      %v834 = vadd.f32 %v832, %v833
      %v835 = vrot.slane %v834, 2
      %v836 = vadd.f32 %v834, %v835
      %v837 = vrot.slane %v836, 1
      %v838 = vadd.f32 %v836, %v837
      %v839 = vadd.f32 %v705, %v838
      %840 = vst [vmem:[%s162 + $0x1] sm:$0x1] %v839
      %p841 = scmp.lt.s32.totalorder %s17, 1
      %s842 = scalar_select %p841, %s17, 1
      %s843 = smul.addr %s842, 8
      %s844 = scalar_lea.vmem %s2, %s843
      // Predicated region
      $region33: #{conv_batchnorm_relu.2} parent=27 // pred_check
        %p845 = pneg %p92
      $region34: #{conv_batchnorm_relu.2} parent=27 // pred_check_branch
        %847 = sbr.rel (%p845) target = $region36
      $region35: #{conv_batchnorm_relu.2} parent=27 // pred_region
        _
      $region36: #{conv_batchnorm_relu.2} parent=27 // pred_fallthru
        _
    $region28: #{conv_batchnorm_relu.2} parent=5 // pred_fallthru
      _
    %p848 = scmp.le.s32.totalorder 2, %s8
    // Predicated region
    $region37: #{conv_batchnorm_relu.2} parent=5 // pred_check
      %p849 = pneg %p848
    $region38: #{conv_batchnorm_relu.2} parent=5 // pred_check_branch
      %851 = sbr.rel (%p849) target = $region40
    $region39: #{conv_batchnorm_relu.2} parent=5 // pred_region
      %s852 = ssub.s32 %s8, 2
      // Predicated region
      $region41: #{conv_batchnorm_relu.2} parent=39 // pred_check
        %p853 = pneg %p98
      $region42: #{conv_batchnorm_relu.2} parent=39 // pred_check_branch
        %855 = sbr.rel (%p853) target = $region44
      $region43: #{conv_batchnorm_relu.2} parent=39 // pred_region
        %p856 = scmp.lt.s32.totalorder %s19, 1
        %s857 = scalar_select %p856, %s19, 1
        %s858 = smul.addr %s857, 8
        %s859 = scalar_lea.vmem %s2, %s858
      $region44: #{conv_batchnorm_relu.2} parent=39 // pred_fallthru
        _
    $region40: #{conv_batchnorm_relu.2} parent=5 // pred_fallthru
      _
  $region6: #{conv_batchnorm_relu.2} parent=0 // loop_footer
    %s12 = sadd.s32 1, %s8
  $region7: #{conv_batchnorm_relu.2} parent=0 // loop_footer_branch
    %7 = sbr.rel target = $region3
  $region8: #{conv_batchnorm_relu.2} parent=0 // loop_exit
    _

// kernel: conv_batchnorm_relu.3
$region0: #{conv_batchnorm_relu.3}
  #allocation0 [shape = 'u32[]', space=smem, size = 0x4, offset = 0x4, fixed_abs, tag = 'smem constant byte address 0x4 - core index']
  #allocation1 [shape = 'u32[144,128]{1,0:T(1,128)}', space=vmem, size = 0x12000, scoped, tag = 'internal scratch']
  %s0 = inlined_call_operand.vmem [shape: f32[1024,128], index: 0, kind: input, shape index: {}]
  %s1 = inlined_call_operand.vmem [shape: f32[128,128], index: 1, kind: input, shape index: {}]
  %s2 = inlined_call_operand.vmem [shape: f32[1,128], index: 2, kind: input, shape index: {}]
  %s3 = inlined_call_operand.vmem [shape: f32[1,128], index: 3, kind: input, shape index: {}]
  %s4 = inlined_call_operand.vmem [shape: f32[1024,128], index: 4, kind: output, shape index: {}]
  %s5 = sld [smem:[#allocation0]]
  $region49: #{conv_batchnorm_relu.3} parent=0
    _
  %s7 = ssub.s32 1, %s5
  %s8 = scalar_select 0, %s7, %s5
  loop: start=0, step=1, limit=4
  $region2: #{conv_batchnorm_relu.3} parent=0 // loop_pre_header
    _
  $region3: #{conv_batchnorm_relu.3} parent=0 // loop_header
    %s10 = sphi 0, %s14
    %p11 = scmp.ge.s32.totalorder %s10, 4
    %s20 = sphi 0, %s22
    %s23 = sphi 0, %s20
    %s24 = sphi 0, %s23
    %s40 = sphi 0, %s24
    %s44 = sphi 0, %s44
    %s46 = sphi 0, %s44
    %s47 = sphi 0, %s46
    %s61 = sphi 0, %s47
    %s65 = sphi 0, %s65
    %s67 = sphi 0, %s65
    %s68 = sphi 0, %s67
    %s82 = sphi 0, %s68
    %s86 = sphi 0, %s86
    %s88 = sphi 0, %s86
    %s89 = sphi 0, %s88
    %s103 = sphi 0, %s89
    %s109 = sphi 0, %s111
    %s112 = sphi 0, %s109
    %s113 = sphi 0, %s112
    %s129 = sphi 0, %s113
  $region4: #{conv_batchnorm_relu.3} parent=0 // loop_header_branch
    %13 = sbr.rel (%p11) target = $region8
  $region5: #{conv_batchnorm_relu.3} parent=0 // loop_body
    %s15 = ssub.s32 %s10, 1
    %s16 = ssub.s32 %s10, 2
    %s17 = sadd.s32 %s10, 1
    %s18 = ssub.s32 %s10, %s17
    %p19 = scmp.eq.s32.totalorder %s18, 0
    %s21 = sadd.s32 %s20, 1
    %s22 = scalar_select %p19, %s20, %s21
    %p25 = pneg %p19
    %p26 = scmp.eq.s32.totalorder %s10, 1
    %p27 = por %p25, %p26
    %p28 = scmp.ne.s32.totalorder %s20, %s23
    %p29 = scmp.eq.s32.totalorder %s10, 0
    %p30 = por %p28, %p29
    %p31 = scmp.ne.s32.totalorder %s20, %s23
    %p32 = scmp.eq.s32.totalorder %s15, 1
    %p33 = por %p31, %p32
    %p34 = scmp.ne.s32.totalorder %s23, %s24
    %p35 = scmp.eq.s32.totalorder %s15, 0
    %p36 = por %p34, %p35
    %p37 = scmp.ne.s32.totalorder %s23, %s24
    %p38 = scmp.eq.s32.totalorder %s16, 1
    %p39 = por %p37, %p38
    %p41 = scmp.ne.s32.totalorder %s24, %s40
    %p42 = scmp.eq.s32.totalorder %s16, 0
    %p43 = por %p41, %p42
    %s45 = sadd.s32 %s44, 1
    %p48 = scmp.eq.s32.totalorder %s10, 1
    %p49 = scmp.ne.s32.totalorder %s44, %s46
    %p50 = scmp.eq.s32.totalorder %s10, 0
    %p51 = por %p49, %p50
    %p52 = scmp.ne.s32.totalorder %s44, %s46
    %p53 = scmp.eq.s32.totalorder %s15, 1
    %p54 = por %p52, %p53
    %p55 = scmp.ne.s32.totalorder %s46, %s47
    %p56 = scmp.eq.s32.totalorder %s15, 0
    %p57 = por %p55, %p56
    %p58 = scmp.ne.s32.totalorder %s46, %s47
    %p59 = scmp.eq.s32.totalorder %s16, 1
    %p60 = por %p58, %p59
    %p62 = scmp.ne.s32.totalorder %s47, %s61
    %p63 = scmp.eq.s32.totalorder %s16, 0
    %p64 = por %p62, %p63
    %s66 = sadd.s32 %s65, 1
    %p69 = scmp.eq.s32.totalorder %s10, 1
    %p70 = scmp.ne.s32.totalorder %s65, %s67
    %p71 = scmp.eq.s32.totalorder %s10, 0
    %p72 = por %p70, %p71
    %p73 = scmp.ne.s32.totalorder %s65, %s67
    %p74 = scmp.eq.s32.totalorder %s15, 1
    %p75 = por %p73, %p74
    %p76 = scmp.ne.s32.totalorder %s67, %s68
    %p77 = scmp.eq.s32.totalorder %s15, 0
    %p78 = por %p76, %p77
    %p79 = scmp.ne.s32.totalorder %s67, %s68
    %p80 = scmp.eq.s32.totalorder %s16, 1
    %p81 = por %p79, %p80
    %p83 = scmp.ne.s32.totalorder %s68, %s82
    %p84 = scmp.eq.s32.totalorder %s16, 0
    %p85 = por %p83, %p84
    %s87 = sadd.s32 %s86, 1
    %p90 = scmp.eq.s32.totalorder %s10, 1
    %p91 = scmp.ne.s32.totalorder %s86, %s88
    %p92 = scmp.eq.s32.totalorder %s10, 0
    %p93 = por %p91, %p92
    %p94 = scmp.ne.s32.totalorder %s86, %s88
    %p95 = scmp.eq.s32.totalorder %s15, 1
    %p96 = por %p94, %p95
    %p97 = scmp.ne.s32.totalorder %s88, %s89
    %p98 = scmp.eq.s32.totalorder %s15, 0
    %p99 = por %p97, %p98
    %p100 = scmp.ne.s32.totalorder %s88, %s89
    %p101 = scmp.eq.s32.totalorder %s16, 1
    %p102 = por %p100, %p101
    %p104 = scmp.ne.s32.totalorder %s89, %s103
    %p105 = scmp.eq.s32.totalorder %s16, 0
    %p106 = por %p104, %p105
    %s107 = ssub.s32 %s10, %s17
    %p108 = scmp.eq.s32.totalorder %s107, 0
    %s110 = sadd.s32 %s109, 1
    %s111 = scalar_select %p108, %s109, %s110
    %p114 = pneg %p108
    %p115 = scmp.eq.s32.totalorder %s10, 1
    %p116 = por %p114, %p115
    %p117 = scmp.ne.s32.totalorder %s109, %s112
    %p118 = scmp.eq.s32.totalorder %s10, 0
    %p119 = por %p117, %p118
    %p120 = scmp.ne.s32.totalorder %s109, %s112
    %p121 = scmp.eq.s32.totalorder %s15, 1
    %p122 = por %p120, %p121
    %p123 = scmp.ne.s32.totalorder %s112, %s113
    %p124 = scmp.eq.s32.totalorder %s15, 0
    %p125 = por %p123, %p124
    %p126 = scmp.ne.s32.totalorder %s112, %s113
    %p127 = scmp.eq.s32.totalorder %s16, 1
    %p128 = por %p126, %p127
    %p130 = scmp.ne.s32.totalorder %s113, %s129
    %p131 = scmp.eq.s32.totalorder %s16, 0
    %p132 = por %p130, %p131
    %p133 = scmp.le.s32.totalorder 1, %s10
    %p134 = scmp.lt.s32.totalorder %s10, 3
    %p135 = pnand %p133, %p134
    %p136 = pneg %p135
    // Predicated region
    $region9: #{conv_batchnorm_relu.3} parent=5 // pred_check
      _
    $region10: #{conv_batchnorm_relu.3} parent=5 // pred_check_branch
      %138 = sbr.rel (%p135) target = $region12
    $region11: #{conv_batchnorm_relu.3} parent=5 // pred_region
      %s139 = ssub.s32 %s10, 1
      // Predicated region
      $region13: #{conv_batchnorm_relu.3} parent=11 // pred_check
        %p140 = pneg %p57
      $region14: #{conv_batchnorm_relu.3} parent=11 // pred_check_branch
        %142 = sbr.rel (%p140) target = $region16
      $region15: #{conv_batchnorm_relu.3} parent=11 // pred_region
        _
      $region16: #{conv_batchnorm_relu.3} parent=11 // pred_fallthru
        _
      // Predicated region
      $region17: #{conv_batchnorm_relu.3} parent=11 // pred_check
        %p143 = pneg %p78
      $region18: #{conv_batchnorm_relu.3} parent=11 // pred_check_branch
        %145 = sbr.rel (%p143) target = $region20
      $region19: #{conv_batchnorm_relu.3} parent=11 // pred_region
        _
      $region20: #{conv_batchnorm_relu.3} parent=11 // pred_fallthru
        _
      // Predicated region
      $region21: #{conv_batchnorm_relu.3} parent=11 // pred_check
        %p146 = pneg %p99
      $region22: #{conv_batchnorm_relu.3} parent=11 // pred_check_branch
        %148 = sbr.rel (%p146) target = $region24
      $region23: #{conv_batchnorm_relu.3} parent=11 // pred_region
        _
      $region24: #{conv_batchnorm_relu.3} parent=11 // pred_fallthru
        _
    $region12: #{conv_batchnorm_relu.3} parent=5 // pred_fallthru
      _
    %p149 = scmp.lt.s32.totalorder %s10, 2
    // Predicated region
    $region25: #{conv_batchnorm_relu.3} parent=5 // pred_check
      %p150 = pneg %p149
    $region26: #{conv_batchnorm_relu.3} parent=5 // pred_check_branch
      %152 = sbr.rel (%p150) target = $region28
    $region27: #{conv_batchnorm_relu.3} parent=5 // pred_region
      // Predicated region
      $region29: #{conv_batchnorm_relu.3} parent=27 // pred_check
        %p153 = pneg %p30
      $region30: #{conv_batchnorm_relu.3} parent=27 // pred_check_branch
        %155 = sbr.rel (%p153) target = $region32
      $region31: #{conv_batchnorm_relu.3} parent=27 // pred_region
        %s156 = smul.u32 64, %s10
        %p157 = scmp.lt.s32.totalorder %s156, 127
        %s158 = scalar_select %p157, %s156, 127
        %s159 = smul.addr %s158, 8
        %s160 = scalar_lea.vmem %s0, %s159
        %s161 = smul.u32 64, %s10
      $region32: #{conv_batchnorm_relu.3} parent=27 // pred_fallthru
        _
    $region28: #{conv_batchnorm_relu.3} parent=5 // pred_fallthru
      _
    %p162 = scmp.le.s32.totalorder 1, %s10
    %p163 = scmp.lt.s32.totalorder %s10, 3
    %p164 = pnand %p162, %p163
    %p165 = pneg %p164
    // Predicated region
    $region33: #{conv_batchnorm_relu.3} parent=5 // pred_check
      _
    $region34: #{conv_batchnorm_relu.3} parent=5 // pred_check_branch
      %167 = sbr.rel (%p164) target = $region36
    $region35: #{conv_batchnorm_relu.3} parent=5 // pred_region
      %s168 = ssub.s32 %s10, 1
      %s169 = smul.u32 64, %s15
      %p170 = scmp.lt.s32.totalorder %s169, 127
      %s171 = scalar_select %p170, %s169, 127
      %s172 = smul.addr %s171, 8
      %s173 = scalar_lea.vmem %s0, %s172
      %p174 = pneg %p36
      %p175 = pneg %p33
      %p176 = pneg %p57
      %p177 = pneg %p54
      %p178 = pneg %p78
      %p179 = pneg %p75
      %p180 = pneg %p99
      %p181 = pneg %p96
      %p182 = pneg %p125
      %p183 = pneg %p122
      %s184 = smul.u32 64, %s15
      %p185 = scmp.lt.s32.totalorder %s184, 127
      %s186 = scalar_select %p185, %s184, 127
      %s187 = smul.addr %s186, 8
      %s188 = scalar_lea.vmem %s4, %s187
      %s189 = smul.u32 64, %s15
      %p190 = scmp.lt.s32.totalorder %s189, 127
      %s191 = scalar_select %p190, %s189, 127
      %s192 = smul.addr %s191, 8
      %s193 = scalar_lea.vmem %s0, %s192
      %s194 = smul.u32 64, %s15
      %s195 = smul.u32 64, %s15
      %p196 = scmp.lt.s32.totalorder %s195, 127
      %s197 = scalar_select %p196, %s195, 127
      %s198 = smul.addr %s197, 8
      %s199 = scalar_lea.vmem %s4, %s198
      %s200 = smul.u32 64, %s15
      %v201 = vld [vmem:[%s193] sm:$0xff]
      %v202 = vld [vmem:[%s193 + $0x8] sm:$0xff]
      %v203 = vld [vmem:[%s193 + $0x10] sm:$0xff]
      %v204 = vld [vmem:[%s193 + $0x18] sm:$0xff]
      %v205 = vld [vmem:[%s193 + $0x20] sm:$0xff]
      %v206 = vld [vmem:[%s193 + $0x28] sm:$0xff]
      %v207 = vld [vmem:[%s193 + $0x30] sm:$0xff]
      %v208 = vld [vmem:[%s193 + $0x38] sm:$0xff]
      %v209 = vld [vmem:[%s193 + $0x40] sm:$0xff]
      %v210 = vld [vmem:[%s193 + $0x48] sm:$0xff]
      %v211 = vld [vmem:[%s193 + $0x50] sm:$0xff]
      %v212 = vld [vmem:[%s193 + $0x58] sm:$0xff]
      %v213 = vld [vmem:[%s193 + $0x60] sm:$0xff]
      %v214 = vld [vmem:[%s193 + $0x68] sm:$0xff]
      %v215 = vld [vmem:[%s193 + $0x70] sm:$0xff]
      %v216 = vld [vmem:[%s193 + $0x78] sm:$0xff]
      %v217 = vld [vmem:[%s193 + $0x80] sm:$0xff]
      %v218 = vld [vmem:[%s193 + $0x88] sm:$0xff]
      %v219 = vld [vmem:[%s193 + $0x90] sm:$0xff]
      %v220 = vld [vmem:[%s193 + $0x98] sm:$0xff]
      %v221 = vld [vmem:[%s193 + $0xa0] sm:$0xff]
      %v222 = vld [vmem:[%s193 + $0xa8] sm:$0xff]
      %v223 = vld [vmem:[%s193 + $0xb0] sm:$0xff]
      %v224 = vld [vmem:[%s193 + $0xb8] sm:$0xff]
      %v225 = vld [vmem:[%s193 + $0xc0] sm:$0xff]
      %v226 = vld [vmem:[%s193 + $0xc8] sm:$0xff]
      %v227 = vld [vmem:[%s193 + $0xd0] sm:$0xff]
      %v228 = vld [vmem:[%s193 + $0xd8] sm:$0xff]
      %v229 = vld [vmem:[%s193 + $0xe0] sm:$0xff]
      %v230 = vld [vmem:[%s193 + $0xe8] sm:$0xff]
      %v231 = vld [vmem:[%s193 + $0xf0] sm:$0xff]
      %v232 = vld [vmem:[%s193 + $0xf8] sm:$0xff]
      %v233 = vld [vmem:[%s193 + $0x100] sm:$0xff]
      %v234 = vld [vmem:[%s193 + $0x108] sm:$0xff]
      %v235 = vld [vmem:[%s193 + $0x110] sm:$0xff]
      %v236 = vld [vmem:[%s193 + $0x118] sm:$0xff]
      %v237 = vld [vmem:[%s193 + $0x120] sm:$0xff]
      %v238 = vld [vmem:[%s193 + $0x128] sm:$0xff]
      %v239 = vld [vmem:[%s193 + $0x130] sm:$0xff]
      %v240 = vld [vmem:[%s193 + $0x138] sm:$0xff]
      %v241 = vld [vmem:[%s193 + $0x140] sm:$0xff]
      %v242 = vld [vmem:[%s193 + $0x148] sm:$0xff]
      %v243 = vld [vmem:[%s193 + $0x150] sm:$0xff]
      %v244 = vld [vmem:[%s193 + $0x158] sm:$0xff]
      %v245 = vld [vmem:[%s193 + $0x160] sm:$0xff]
      %v246 = vld [vmem:[%s193 + $0x168] sm:$0xff]
      %v247 = vld [vmem:[%s193 + $0x170] sm:$0xff]
      %v248 = vld [vmem:[%s193 + $0x178] sm:$0xff]
      %v249 = vld [vmem:[%s193 + $0x180] sm:$0xff]
      %v250 = vld [vmem:[%s193 + $0x188] sm:$0xff]
      %v251 = vld [vmem:[%s193 + $0x190] sm:$0xff]
      %v252 = vld [vmem:[%s193 + $0x198] sm:$0xff]
      %v253 = vld [vmem:[%s193 + $0x1a0] sm:$0xff]
      %v254 = vld [vmem:[%s193 + $0x1a8] sm:$0xff]
      %v255 = vld [vmem:[%s193 + $0x1b0] sm:$0xff]
      %v256 = vld [vmem:[%s193 + $0x1b8] sm:$0xff]
      %v257 = vld [vmem:[%s193 + $0x1c0] sm:$0xff]
      %v258 = vld [vmem:[%s193 + $0x1c8] sm:$0xff]
      %v259 = vld [vmem:[%s193 + $0x1d0] sm:$0xff]
      %v260 = vld [vmem:[%s193 + $0x1d8] sm:$0xff]
      %v261 = vld [vmem:[%s193 + $0x1e0] sm:$0xff]
      %v262 = vld [vmem:[%s193 + $0x1e8] sm:$0xff]
      %v263 = vld [vmem:[%s193 + $0x1f0] sm:$0xff]
      %v264 = vld [vmem:[%s193 + $0x1f8] sm:$0xff]
      %v265 = vld [vmem:[%s1] sm:$0xff]
      %v266 = vld [vmem:[%s1 + $0x8] sm:$0xff]
      %v267 = vld [vmem:[%s1 + $0x10] sm:$0xff]
      %v268 = vld [vmem:[%s1 + $0x18] sm:$0xff]
      %v269 = vld [vmem:[%s1 + $0x20] sm:$0xff]
      %v270 = vld [vmem:[%s1 + $0x28] sm:$0xff]
      %v271 = vld [vmem:[%s1 + $0x30] sm:$0xff]
      %v272 = vld [vmem:[%s1 + $0x38] sm:$0xff]
      %v273 = vld [vmem:[%s1 + $0x40] sm:$0xff]
      %v274 = vld [vmem:[%s1 + $0x48] sm:$0xff]
      %v275 = vld [vmem:[%s1 + $0x50] sm:$0xff]
      %v276 = vld [vmem:[%s1 + $0x58] sm:$0xff]
      %v277 = vld [vmem:[%s1 + $0x60] sm:$0xff]
      %v278 = vld [vmem:[%s1 + $0x68] sm:$0xff]
      %v279 = vld [vmem:[%s1 + $0x70] sm:$0xff]
      %v280 = vld [vmem:[%s1 + $0x78] sm:$0xff]
      %281 = vmatprep.subr.mxu0 0.0
      %282 = vmatpush1.msra.mxu0 %v265
      %283 = vmatprep.subr.mxu0 0.0
      %284 = vmatpush1.msra.mxu0 %v266
      %285 = vmatprep.subr.mxu0 0.0
      %286 = vmatpush1.msra.mxu0 %v267
      %287 = vmatprep.subr.mxu0 0.0
      %288 = vmatpush1.msra.mxu0 %v268
      %289 = vmatprep.subr.mxu0 0.0
      %290 = vmatpush1.msra.mxu0 %v269
      %291 = vmatprep.subr.mxu0 0.0
      %292 = vmatpush1.msra.mxu0 %v270
      %293 = vmatprep.subr.mxu0 0.0
      %294 = vmatpush1.msra.mxu0 %v271
      %295 = vmatprep.subr.mxu0 0.0
      %296 = vmatpush1.msra.mxu0 %v272
      %297 = vmatprep.subr.mxu0 0.0
      %298 = vmatpush1.msra.mxu0 %v273
      %299 = vmatprep.subr.mxu0 0.0
      %300 = vmatpush1.msra.mxu0 %v274
      %301 = vmatprep.subr.mxu0 0.0
      %302 = vmatpush1.msra.mxu0 %v275
      %303 = vmatprep.subr.mxu0 0.0
      %304 = vmatpush1.msra.mxu0 %v276
      %305 = vmatprep.subr.mxu0 0.0
      %306 = vmatpush1.msra.mxu0 %v277
      %307 = vmatprep.subr.mxu0 0.0
      %308 = vmatpush1.msra.mxu0 %v278
      %309 = vmatprep.subr.mxu0 0.0
      %310 = vmatpush1.msra.mxu0 %v279
      %311 = vmatprep.subr.mxu0 0.0
      %312 = vmatpush1.msra.mxu0 %v280
      %313 = vmatprep.subr.mxu0 0.0
      %314 = vmatpush1.msra.mxu0 0.0
      %315 = vmatprep.subr.mxu0 0.0
      %316 = vmatpush1.msra.mxu0 0.0
      %317 = vmatprep.subr.mxu0 0.0
      %318 = vmatpush1.msra.mxu0 0.0
      %319 = vmatprep.subr.mxu0 0.0
      %320 = vmatpush1.msra.mxu0 0.0
      %321 = vmatprep.subr.mxu0 0.0
      %322 = vmatpush1.msra.mxu0 0.0
      %323 = vmatprep.subr.mxu0 0.0
      %324 = vmatpush1.msra.mxu0 0.0
      %325 = vmatprep.subr.mxu0 0.0
      %326 = vmatpush1.msra.mxu0 0.0
      %327 = vmatprep.subr.mxu0 0.0
      %328 = vmatpush1.msra.mxu0 0.0
      %329 = vmatprep.subr.mxu0 0.0
      %330 = vmatpush1.msra.mxu0 0.0
      %331 = vmatprep.subr.mxu0 0.0
      %332 = vmatpush1.msra.mxu0 0.0
      %333 = vmatprep.subr.mxu0 0.0
      %334 = vmatpush1.msra.mxu0 0.0
      %335 = vmatprep.subr.mxu0 0.0
      %336 = vmatpush1.msra.mxu0 0.0
      %337 = vmatprep.subr.mxu0 0.0
      %338 = vmatpush1.msra.mxu0 0.0
      %339 = vmatprep.subr.mxu0 0.0
      %340 = vmatpush1.msra.mxu0 0.0
      %341 = vmatprep.subr.mxu0 0.0
      %342 = vmatpush1.msra.mxu0 0.0
      %343 = vmatprep.subr.mxu0 0.0
      %344 = vmatpush1.msra.mxu0 0.0
      %345 = vmatprep.mubr.f32.mxu0 0.0
      %346 = vmatmul.mubr.f32.gmra.mrb[0].mxu0 %v201
      %v347 = vpop.f32.mrb[0].mxu0
      %v348 = vadd.f32 0.0, %v347
      %v349 = vpop.f32.mrb[0].mxu0
      %350 = vmatprep.mubr.f32.mxu0 0.0
      %351 = vmatmul.mubr.f32.gmra.mrb[0].mxu0 %v202
      %v352 = vpop.f32.mrb[0].mxu0
      %v353 = vadd.f32 0.0, %v352
      %v354 = vpop.f32.mrb[0].mxu0
      %355 = vmatprep.mubr.f32.mxu0 0.0
      %356 = vmatmul.mubr.f32.gmra.mrb[0].mxu0 %v203
      %v357 = vpop.f32.mrb[0].mxu0
      %v358 = vadd.f32 0.0, %v357
      %v359 = vpop.f32.mrb[0].mxu0
      %360 = vmatprep.mubr.f32.mxu0 0.0
      %361 = vmatmul.mubr.f32.gmra.mrb[0].mxu0 %v204
      %v362 = vpop.f32.mrb[0].mxu0
      %v363 = vadd.f32 0.0, %v362
      %v364 = vpop.f32.mrb[0].mxu0
      %365 = vmatprep.mubr.f32.mxu0 0.0
      %366 = vmatmul.mubr.f32.gmra.mrb[0].mxu0 %v205
      %v367 = vpop.f32.mrb[0].mxu0
      %v368 = vadd.f32 0.0, %v367
      %v369 = vpop.f32.mrb[0].mxu0
      %370 = vmatprep.mubr.f32.mxu0 0.0
      %371 = vmatmul.mubr.f32.gmra.mrb[0].mxu0 %v206
      %v372 = vpop.f32.mrb[0].mxu0
      %v373 = vadd.f32 0.0, %v372
      %v374 = vpop.f32.mrb[0].mxu0
      %375 = vmatprep.mubr.f32.mxu0 0.0
      %376 = vmatmul.mubr.f32.gmra.mrb[0].mxu0 %v207
      %v377 = vpop.f32.mrb[0].mxu0
      %v378 = vadd.f32 0.0, %v377
      %v379 = vpop.f32.mrb[0].mxu0
      %380 = vmatprep.mubr.f32.mxu0 0.0
      %381 = vmatmul.mubr.f32.gmra.mrb[0].mxu0 %v208
      %v382 = vpop.f32.mrb[0].mxu0
      %v383 = vadd.f32 0.0, %v382
      %v384 = vpop.f32.mrb[0].mxu0
      %385 = vmatprep.mubr.f32.mxu0 0.0
      %386 = vmatmul.mubr.f32.gmra.mrb[0].mxu0 %v209
      %v387 = vpop.f32.mrb[0].mxu0
      %v388 = vadd.f32 0.0, %v387
      %v389 = vpop.f32.mrb[0].mxu0
      %390 = vmatprep.mubr.f32.mxu0 0.0
      %391 = vmatmul.mubr.f32.gmra.mrb[0].mxu0 %v210
      %v392 = vpop.f32.mrb[0].mxu0
      %v393 = vadd.f32 0.0, %v392
      %v394 = vpop.f32.mrb[0].mxu0
      %395 = vmatprep.mubr.f32.mxu0 0.0
      %396 = vmatmul.mubr.f32.gmra.mrb[0].mxu0 %v211
      %v397 = vpop.f32.mrb[0].mxu0
      %v398 = vadd.f32 0.0, %v397
      %v399 = vpop.f32.mrb[0].mxu0
      %400 = vmatprep.mubr.f32.mxu0 0.0
      %401 = vmatmul.mubr.f32.gmra.mrb[0].mxu0 %v212
      %v402 = vpop.f32.mrb[0].mxu0
      %v403 = vadd.f32 0.0, %v402
      %v404 = vpop.f32.mrb[0].mxu0
      %405 = vmatprep.mubr.f32.mxu0 0.0
      %406 = vmatmul.mubr.f32.gmra.mrb[0].mxu0 %v213
      %v407 = vpop.f32.mrb[0].mxu0
      %v408 = vadd.f32 0.0, %v407
      %v409 = vpop.f32.mrb[0].mxu0
      %410 = vmatprep.mubr.f32.mxu0 0.0
      %411 = vmatmul.mubr.f32.gmra.mrb[0].mxu0 %v214
      %v412 = vpop.f32.mrb[0].mxu0
      %v413 = vadd.f32 0.0, %v412
      %v414 = vpop.f32.mrb[0].mxu0
      %415 = vmatprep.mubr.f32.mxu0 0.0
      %416 = vmatmul.mubr.f32.gmra.mrb[0].mxu0 %v215
      %v417 = vpop.f32.mrb[0].mxu0
      %v418 = vadd.f32 0.0, %v417
      %v419 = vpop.f32.mrb[0].mxu0
      %420 = vmatprep.mubr.f32.mxu0 0.0
      %421 = vmatmul.mubr.f32.gmra.mrb[0].mxu0 %v216
      %v422 = vpop.f32.mrb[0].mxu0
      %v423 = vadd.f32 0.0, %v422
      %v424 = vpop.f32.mrb[0].mxu0
      %425 = vmatprep.mubr.f32.mxu0 0.0
      %426 = vmatmul.mubr.f32.gmra.mrb[0].mxu0 %v217
      %v427 = vpop.f32.mrb[0].mxu0
      %v428 = vadd.f32 0.0, %v427
      %v429 = vpop.f32.mrb[0].mxu0
      %430 = vmatprep.mubr.f32.mxu0 0.0
      %431 = vmatmul.mubr.f32.gmra.mrb[0].mxu0 %v218
      %v432 = vpop.f32.mrb[0].mxu0
      %v433 = vadd.f32 0.0, %v432
      %v434 = vpop.f32.mrb[0].mxu0
      %435 = vmatprep.mubr.f32.mxu0 0.0
      %436 = vmatmul.mubr.f32.gmra.mrb[0].mxu0 %v219
      %v437 = vpop.f32.mrb[0].mxu0
      %v438 = vadd.f32 0.0, %v437
      %v439 = vpop.f32.mrb[0].mxu0
      %440 = vmatprep.mubr.f32.mxu0 0.0
      %441 = vmatmul.mubr.f32.gmra.mrb[0].mxu0 %v220
      %v442 = vpop.f32.mrb[0].mxu0
      %v443 = vadd.f32 0.0, %v442
      %v444 = vpop.f32.mrb[0].mxu0
      %445 = vmatprep.mubr.f32.mxu0 0.0
      %446 = vmatmul.mubr.f32.gmra.mrb[0].mxu0 %v221
      %v447 = vpop.f32.mrb[0].mxu0
      %v448 = vadd.f32 0.0, %v447
      %v449 = vpop.f32.mrb[0].mxu0
      %450 = vmatprep.mubr.f32.mxu0 0.0
      %451 = vmatmul.mubr.f32.gmra.mrb[0].mxu0 %v222
      %v452 = vpop.f32.mrb[0].mxu0
      %v453 = vadd.f32 0.0, %v452
      %v454 = vpop.f32.mrb[0].mxu0
      %455 = vmatprep.mubr.f32.mxu0 0.0
      %456 = vmatmul.mubr.f32.gmra.mrb[0].mxu0 %v223
      %v457 = vpop.f32.mrb[0].mxu0
      %v458 = vadd.f32 0.0, %v457
      %v459 = vpop.f32.mrb[0].mxu0
      %460 = vmatprep.mubr.f32.mxu0 0.0
      %461 = vmatmul.mubr.f32.gmra.mrb[0].mxu0 %v224
      %v462 = vpop.f32.mrb[0].mxu0
      %v463 = vadd.f32 0.0, %v462
      %v464 = vpop.f32.mrb[0].mxu0
      %465 = vmatprep.mubr.f32.mxu0 0.0
      %466 = vmatmul.mubr.f32.gmra.mrb[0].mxu0 %v225
      %v467 = vpop.f32.mrb[0].mxu0
      %v468 = vadd.f32 0.0, %v467
      %v469 = vpop.f32.mrb[0].mxu0
      %470 = vmatprep.mubr.f32.mxu0 0.0
      %471 = vmatmul.mubr.f32.gmra.mrb[0].mxu0 %v226
      %v472 = vpop.f32.mrb[0].mxu0
      %v473 = vadd.f32 0.0, %v472
      %v474 = vpop.f32.mrb[0].mxu0
      %475 = vmatprep.mubr.f32.mxu0 0.0
      %476 = vmatmul.mubr.f32.gmra.mrb[0].mxu0 %v227
      %v477 = vpop.f32.mrb[0].mxu0
      %v478 = vadd.f32 0.0, %v477
      %v479 = vpop.f32.mrb[0].mxu0
      %480 = vmatprep.mubr.f32.mxu0 0.0
      %481 = vmatmul.mubr.f32.gmra.mrb[0].mxu0 %v228
      %v482 = vpop.f32.mrb[0].mxu0
      %v483 = vadd.f32 0.0, %v482
      %v484 = vpop.f32.mrb[0].mxu0
      %485 = vmatprep.mubr.f32.mxu0 0.0
      %486 = vmatmul.mubr.f32.gmra.mrb[0].mxu0 %v229
      %v487 = vpop.f32.mrb[0].mxu0
      %v488 = vadd.f32 0.0, %v487
      %v489 = vpop.f32.mrb[0].mxu0
      %490 = vmatprep.mubr.f32.mxu0 0.0
      %491 = vmatmul.mubr.f32.gmra.mrb[0].mxu0 %v230
      %v492 = vpop.f32.mrb[0].mxu0
      %v493 = vadd.f32 0.0, %v492
      %v494 = vpop.f32.mrb[0].mxu0
      %495 = vmatprep.mubr.f32.mxu0 0.0
      %496 = vmatmul.mubr.f32.gmra.mrb[0].mxu0 %v231
      %v497 = vpop.f32.mrb[0].mxu0
      %v498 = vadd.f32 0.0, %v497
      %v499 = vpop.f32.mrb[0].mxu0
      %500 = vmatprep.mubr.f32.mxu0 0.0
      %501 = vmatmul.mubr.f32.gmra.mrb[0].mxu0 %v232
      %v502 = vpop.f32.mrb[0].mxu0
      %v503 = vadd.f32 0.0, %v502
      %v504 = vpop.f32.mrb[0].mxu0
      %505 = vmatprep.mubr.f32.mxu0 0.0
      %506 = vmatmul.mubr.f32.gmra.mrb[0].mxu0 %v233
      %v507 = vpop.f32.mrb[0].mxu0
      %v508 = vadd.f32 0.0, %v507
      %v509 = vpop.f32.mrb[0].mxu0
      %510 = vmatprep.mubr.f32.mxu0 0.0
      %511 = vmatmul.mubr.f32.gmra.mrb[0].mxu0 %v234
      %v512 = vpop.f32.mrb[0].mxu0
      %v513 = vadd.f32 0.0, %v512
      %v514 = vpop.f32.mrb[0].mxu0
      %515 = vmatprep.mubr.f32.mxu0 0.0
      %516 = vmatmul.mubr.f32.gmra.mrb[0].mxu0 %v235
      %v517 = vpop.f32.mrb[0].mxu0
      %v518 = vadd.f32 0.0, %v517
      %v519 = vpop.f32.mrb[0].mxu0
      %520 = vmatprep.mubr.f32.mxu0 0.0
      %521 = vmatmul.mubr.f32.gmra.mrb[0].mxu0 %v236
      %v522 = vpop.f32.mrb[0].mxu0
      %v523 = vadd.f32 0.0, %v522
      %v524 = vpop.f32.mrb[0].mxu0
      %525 = vmatprep.mubr.f32.mxu0 0.0
      %526 = vmatmul.mubr.f32.gmra.mrb[0].mxu0 %v237
      %v527 = vpop.f32.mrb[0].mxu0
      %v528 = vadd.f32 0.0, %v527
      %v529 = vpop.f32.mrb[0].mxu0
      %530 = vmatprep.mubr.f32.mxu0 0.0
      %531 = vmatmul.mubr.f32.gmra.mrb[0].mxu0 %v238
      %v532 = vpop.f32.mrb[0].mxu0
      %v533 = vadd.f32 0.0, %v532
      %v534 = vpop.f32.mrb[0].mxu0
      %535 = vmatprep.mubr.f32.mxu0 0.0
      %536 = vmatmul.mubr.f32.gmra.mrb[0].mxu0 %v239
      %v537 = vpop.f32.mrb[0].mxu0
      %v538 = vadd.f32 0.0, %v537
      %v539 = vpop.f32.mrb[0].mxu0
      %540 = vmatprep.mubr.f32.mxu0 0.0
      %541 = vmatmul.mubr.f32.gmra.mrb[0].mxu0 %v240
      %v542 = vpop.f32.mrb[0].mxu0
      %v543 = vadd.f32 0.0, %v542
      %v544 = vpop.f32.mrb[0].mxu0
      %545 = vmatprep.mubr.f32.mxu0 0.0
      %546 = vmatmul.mubr.f32.gmra.mrb[0].mxu0 %v241
      %v547 = vpop.f32.mrb[0].mxu0
      %v548 = vadd.f32 0.0, %v547
      %v549 = vpop.f32.mrb[0].mxu0
      %550 = vmatprep.mubr.f32.mxu0 0.0
      %551 = vmatmul.mubr.f32.gmra.mrb[0].mxu0 %v242
      %v552 = vpop.f32.mrb[0].mxu0
      %v553 = vadd.f32 0.0, %v552
      %v554 = vpop.f32.mrb[0].mxu0
      %555 = vmatprep.mubr.f32.mxu0 0.0
      %556 = vmatmul.mubr.f32.gmra.mrb[0].mxu0 %v243
      %v557 = vpop.f32.mrb[0].mxu0
      %v558 = vadd.f32 0.0, %v557
      %v559 = vpop.f32.mrb[0].mxu0
      %560 = vmatprep.mubr.f32.mxu0 0.0
      %561 = vmatmul.mubr.f32.gmra.mrb[0].mxu0 %v244
      %v562 = vpop.f32.mrb[0].mxu0
      %v563 = vadd.f32 0.0, %v562
      %v564 = vpop.f32.mrb[0].mxu0
      %565 = vmatprep.mubr.f32.mxu0 0.0
      %566 = vmatmul.mubr.f32.gmra.mrb[0].mxu0 %v245
      %v567 = vpop.f32.mrb[0].mxu0
      %v568 = vadd.f32 0.0, %v567
      %v569 = vpop.f32.mrb[0].mxu0
      %570 = vmatprep.mubr.f32.mxu0 0.0
      %571 = vmatmul.mubr.f32.gmra.mrb[0].mxu0 %v246
      %v572 = vpop.f32.mrb[0].mxu0
      %v573 = vadd.f32 0.0, %v572
      %v574 = vpop.f32.mrb[0].mxu0
      %575 = vmatprep.mubr.f32.mxu0 0.0
      %576 = vmatmul.mubr.f32.gmra.mrb[0].mxu0 %v247
      %v577 = vpop.f32.mrb[0].mxu0
      %v578 = vadd.f32 0.0, %v577
      %v579 = vpop.f32.mrb[0].mxu0
      %580 = vmatprep.mubr.f32.mxu0 0.0
      %581 = vmatmul.mubr.f32.gmra.mrb[0].mxu0 %v248
      %v582 = vpop.f32.mrb[0].mxu0
      %v583 = vadd.f32 0.0, %v582
      %v584 = vpop.f32.mrb[0].mxu0
      %585 = vmatprep.mubr.f32.mxu0 0.0
      %586 = vmatmul.mubr.f32.gmra.mrb[0].mxu0 %v249
      %v587 = vpop.f32.mrb[0].mxu0
      %v588 = vadd.f32 0.0, %v587
      %v589 = vpop.f32.mrb[0].mxu0
      %590 = vmatprep.mubr.f32.mxu0 0.0
      %591 = vmatmul.mubr.f32.gmra.mrb[0].mxu0 %v250
      %v592 = vpop.f32.mrb[0].mxu0
      %v593 = vadd.f32 0.0, %v592
      %v594 = vpop.f32.mrb[0].mxu0
      %595 = vmatprep.mubr.f32.mxu0 0.0
      %596 = vmatmul.mubr.f32.gmra.mrb[0].mxu0 %v251
      %v597 = vpop.f32.mrb[0].mxu0
      %v598 = vadd.f32 0.0, %v597
      %v599 = vpop.f32.mrb[0].mxu0
      %600 = vmatprep.mubr.f32.mxu0 0.0
      %601 = vmatmul.mubr.f32.gmra.mrb[0].mxu0 %v252
      %v602 = vpop.f32.mrb[0].mxu0
      %v603 = vadd.f32 0.0, %v602
      %v604 = vpop.f32.mrb[0].mxu0
      %605 = vmatprep.mubr.f32.mxu0 0.0
      %606 = vmatmul.mubr.f32.gmra.mrb[0].mxu0 %v253
      %v607 = vpop.f32.mrb[0].mxu0
      %v608 = vadd.f32 0.0, %v607
      %v609 = vpop.f32.mrb[0].mxu0
      %610 = vmatprep.mubr.f32.mxu0 0.0
      %611 = vmatmul.mubr.f32.gmra.mrb[0].mxu0 %v254
      %v612 = vpop.f32.mrb[0].mxu0
      %v613 = vadd.f32 0.0, %v612
      %v614 = vpop.f32.mrb[0].mxu0
      %615 = vmatprep.mubr.f32.mxu0 0.0
      %616 = vmatmul.mubr.f32.gmra.mrb[0].mxu0 %v255
      %v617 = vpop.f32.mrb[0].mxu0
      %v618 = vadd.f32 0.0, %v617
      %v619 = vpop.f32.mrb[0].mxu0
      %620 = vmatprep.mubr.f32.mxu0 0.0
      %621 = vmatmul.mubr.f32.gmra.mrb[0].mxu0 %v256
      %v622 = vpop.f32.mrb[0].mxu0
      %v623 = vadd.f32 0.0, %v622
      %v624 = vpop.f32.mrb[0].mxu0
      %625 = vmatprep.mubr.f32.mxu0 0.0
      %626 = vmatmul.mubr.f32.gmra.mrb[0].mxu0 %v257
      %v627 = vpop.f32.mrb[0].mxu0
      %v628 = vadd.f32 0.0, %v627
      %v629 = vpop.f32.mrb[0].mxu0
      %630 = vmatprep.mubr.f32.mxu0 0.0
      %631 = vmatmul.mubr.f32.gmra.mrb[0].mxu0 %v258
      %v632 = vpop.f32.mrb[0].mxu0
      %v633 = vadd.f32 0.0, %v632
      %v634 = vpop.f32.mrb[0].mxu0
      %635 = vmatprep.mubr.f32.mxu0 0.0
      %636 = vmatmul.mubr.f32.gmra.mrb[0].mxu0 %v259
      %v637 = vpop.f32.mrb[0].mxu0
      %v638 = vadd.f32 0.0, %v637
      %v639 = vpop.f32.mrb[0].mxu0
      %640 = vmatprep.mubr.f32.mxu0 0.0
      %641 = vmatmul.mubr.f32.gmra.mrb[0].mxu0 %v260
      %v642 = vpop.f32.mrb[0].mxu0
      %v643 = vadd.f32 0.0, %v642
      %v644 = vpop.f32.mrb[0].mxu0
      %645 = vmatprep.mubr.f32.mxu0 0.0
      %646 = vmatmul.mubr.f32.gmra.mrb[0].mxu0 %v261
      %v647 = vpop.f32.mrb[0].mxu0
      %v648 = vadd.f32 0.0, %v647
      %v649 = vpop.f32.mrb[0].mxu0
      %650 = vmatprep.mubr.f32.mxu0 0.0
      %651 = vmatmul.mubr.f32.gmra.mrb[0].mxu0 %v262
      %v652 = vpop.f32.mrb[0].mxu0
      %v653 = vadd.f32 0.0, %v652
      %v654 = vpop.f32.mrb[0].mxu0
      %655 = vmatprep.mubr.f32.mxu0 0.0
      %656 = vmatmul.mubr.f32.gmra.mrb[0].mxu0 %v263
      %v657 = vpop.f32.mrb[0].mxu0
      %v658 = vadd.f32 0.0, %v657
      %v659 = vpop.f32.mrb[0].mxu0
      %660 = vmatprep.mubr.f32.mxu0 0.0
      %661 = vmatmul.mubr.f32.gmra.mrb[0].mxu0 %v264
      %v662 = vpop.f32.mrb[0].mxu0
      %v663 = vadd.f32 0.0, %v662
      %v664 = vpop.f32.mrb[0].mxu0
      %665 = vdwg.mxu0
      %v666 = vld [vmem:[%s2] sm:$0x1]
      %v668 = vlaneseq
      %v669 = vshrl.u32 %v668, 7
      %v670 = vsub.s32 0, %v669
      %v671 = vrot.slane %v666, %v670
      %v673 = vmul.f32 %v348, %v671
      %v674 = vmul.f32 %v353, %v671
      %v675 = vmul.f32 %v358, %v671
      %v676 = vmul.f32 %v363, %v671
      %v677 = vmul.f32 %v368, %v671
      %v678 = vmul.f32 %v373, %v671
      %v679 = vmul.f32 %v378, %v671
      %v680 = vmul.f32 %v383, %v671
      %v681 = vmul.f32 %v388, %v671
      %v682 = vmul.f32 %v393, %v671
      %v683 = vmul.f32 %v398, %v671
      %v684 = vmul.f32 %v403, %v671
      %v685 = vmul.f32 %v408, %v671
      %v686 = vmul.f32 %v413, %v671
      %v687 = vmul.f32 %v418, %v671
      %v688 = vmul.f32 %v423, %v671
      %v689 = vmul.f32 %v428, %v671
      %v690 = vmul.f32 %v433, %v671
      %v691 = vmul.f32 %v438, %v671
      %v692 = vmul.f32 %v443, %v671
      %v693 = vmul.f32 %v448, %v671
      %v694 = vmul.f32 %v453, %v671
      %v695 = vmul.f32 %v458, %v671
      %v696 = vmul.f32 %v463, %v671
      %v697 = vmul.f32 %v468, %v671
      %v698 = vmul.f32 %v473, %v671
      %v699 = vmul.f32 %v478, %v671
      %v700 = vmul.f32 %v483, %v671
      %v701 = vmul.f32 %v488, %v671
      %v702 = vmul.f32 %v493, %v671
      %v703 = vmul.f32 %v498, %v671
      %v704 = vmul.f32 %v503, %v671
      %v705 = vmul.f32 %v508, %v671
      %v706 = vmul.f32 %v513, %v671
      %v707 = vmul.f32 %v518, %v671
      %v708 = vmul.f32 %v523, %v671
      %v709 = vmul.f32 %v528, %v671
      %v710 = vmul.f32 %v533, %v671
      %v711 = vmul.f32 %v538, %v671
      %v712 = vmul.f32 %v543, %v671
      %v713 = vmul.f32 %v548, %v671
      %v714 = vmul.f32 %v553, %v671
      %v715 = vmul.f32 %v558, %v671
      %v716 = vmul.f32 %v563, %v671
      %v717 = vmul.f32 %v568, %v671
      %v718 = vmul.f32 %v573, %v671
      %v719 = vmul.f32 %v578, %v671
      %v720 = vmul.f32 %v583, %v671
      %v721 = vmul.f32 %v588, %v671
      %v722 = vmul.f32 %v593, %v671
      %v723 = vmul.f32 %v598, %v671
      %v724 = vmul.f32 %v603, %v671
      %v725 = vmul.f32 %v608, %v671
      %v726 = vmul.f32 %v613, %v671
      %v727 = vmul.f32 %v618, %v671
      %v728 = vmul.f32 %v623, %v671
      %v729 = vmul.f32 %v628, %v671
      %v730 = vmul.f32 %v633, %v671
      %v731 = vmul.f32 %v638, %v671
      %v732 = vmul.f32 %v643, %v671
      %v733 = vmul.f32 %v648, %v671
      %v734 = vmul.f32 %v653, %v671
      %v735 = vmul.f32 %v658, %v671
      %v736 = vmul.f32 %v663, %v671
      %v737 = vld [vmem:[%s3] sm:$0x1]
      %v739 = vlaneseq
      %v740 = vshrl.u32 %v739, 7
      %v741 = vsub.s32 0, %v740
      %v742 = vrot.slane %v737, %v741
      %v744 = vadd.f32 %v673, %v742
      %v745 = vadd.f32 %v674, %v742
      %v746 = vadd.f32 %v675, %v742
      %v747 = vadd.f32 %v676, %v742
      %v748 = vadd.f32 %v677, %v742
      %v749 = vadd.f32 %v678, %v742
      %v750 = vadd.f32 %v679, %v742
      %v751 = vadd.f32 %v680, %v742
      %v752 = vadd.f32 %v681, %v742
      %v753 = vadd.f32 %v682, %v742
      %v754 = vadd.f32 %v683, %v742
      %v755 = vadd.f32 %v684, %v742
      %v756 = vadd.f32 %v685, %v742
      %v757 = vadd.f32 %v686, %v742
      %v758 = vadd.f32 %v687, %v742
      %v759 = vadd.f32 %v688, %v742
      %v760 = vadd.f32 %v689, %v742
      %v761 = vadd.f32 %v690, %v742
      %v762 = vadd.f32 %v691, %v742
      %v763 = vadd.f32 %v692, %v742
      %v764 = vadd.f32 %v693, %v742
      %v765 = vadd.f32 %v694, %v742
      %v766 = vadd.f32 %v695, %v742
      %v767 = vadd.f32 %v696, %v742
      %v768 = vadd.f32 %v697, %v742
      %v769 = vadd.f32 %v698, %v742
      %v770 = vadd.f32 %v699, %v742
      %v771 = vadd.f32 %v700, %v742
      %v772 = vadd.f32 %v701, %v742
      %v773 = vadd.f32 %v702, %v742
      %v774 = vadd.f32 %v703, %v742
      %v775 = vadd.f32 %v704, %v742
      %v776 = vadd.f32 %v705, %v742
      %v777 = vadd.f32 %v706, %v742
      %v778 = vadd.f32 %v707, %v742
      %v779 = vadd.f32 %v708, %v742
      %v780 = vadd.f32 %v709, %v742
      %v781 = vadd.f32 %v710, %v742
      %v782 = vadd.f32 %v711, %v742
      %v783 = vadd.f32 %v712, %v742
      %v784 = vadd.f32 %v713, %v742
      %v785 = vadd.f32 %v714, %v742
      %v786 = vadd.f32 %v715, %v742
      %v787 = vadd.f32 %v716, %v742
      %v788 = vadd.f32 %v717, %v742
      %v789 = vadd.f32 %v718, %v742
      %v790 = vadd.f32 %v719, %v742
      %v791 = vadd.f32 %v720, %v742
      %v792 = vadd.f32 %v721, %v742
      %v793 = vadd.f32 %v722, %v742
      %v794 = vadd.f32 %v723, %v742
      %v795 = vadd.f32 %v724, %v742
      %v796 = vadd.f32 %v725, %v742
      %v797 = vadd.f32 %v726, %v742
      %v798 = vadd.f32 %v727, %v742
      %v799 = vadd.f32 %v728, %v742
      %v800 = vadd.f32 %v729, %v742
      %v801 = vadd.f32 %v730, %v742
      %v802 = vadd.f32 %v731, %v742
      %v803 = vadd.f32 %v732, %v742
      %v804 = vadd.f32 %v733, %v742
      %v805 = vadd.f32 %v734, %v742
      %v806 = vadd.f32 %v735, %v742
      %v807 = vadd.f32 %v736, %v742
      %v808 = vmax.f32 %v744, 0.0
      %v809 = vmax.f32 %v745, 0.0
      %v810 = vmax.f32 %v746, 0.0
      %v811 = vmax.f32 %v747, 0.0
      %v812 = vmax.f32 %v748, 0.0
      %v813 = vmax.f32 %v749, 0.0
      %v814 = vmax.f32 %v750, 0.0
      %v815 = vmax.f32 %v751, 0.0
      %v816 = vmax.f32 %v752, 0.0
      %v817 = vmax.f32 %v753, 0.0
      %v818 = vmax.f32 %v754, 0.0
      %v819 = vmax.f32 %v755, 0.0
      %v820 = vmax.f32 %v756, 0.0
      %v821 = vmax.f32 %v757, 0.0
      %v822 = vmax.f32 %v758, 0.0
      %v823 = vmax.f32 %v759, 0.0
      %v824 = vmax.f32 %v760, 0.0
      %v825 = vmax.f32 %v761, 0.0
      %v826 = vmax.f32 %v762, 0.0
      %v827 = vmax.f32 %v763, 0.0
      %v828 = vmax.f32 %v764, 0.0
      %v829 = vmax.f32 %v765, 0.0
      %v830 = vmax.f32 %v766, 0.0
      %v831 = vmax.f32 %v767, 0.0
      %v832 = vmax.f32 %v768, 0.0
      %v833 = vmax.f32 %v769, 0.0
      %v834 = vmax.f32 %v770, 0.0
      %v835 = vmax.f32 %v771, 0.0
      %v836 = vmax.f32 %v772, 0.0
      %v837 = vmax.f32 %v773, 0.0
      %v838 = vmax.f32 %v774, 0.0
      %v839 = vmax.f32 %v775, 0.0
      %v840 = vmax.f32 %v776, 0.0
      %v841 = vmax.f32 %v777, 0.0
      %v842 = vmax.f32 %v778, 0.0
      %v843 = vmax.f32 %v779, 0.0
      %v844 = vmax.f32 %v780, 0.0
      %v845 = vmax.f32 %v781, 0.0
      %v846 = vmax.f32 %v782, 0.0
      %v847 = vmax.f32 %v783, 0.0
      %v848 = vmax.f32 %v784, 0.0
      %v849 = vmax.f32 %v785, 0.0
      %v850 = vmax.f32 %v786, 0.0
      %v851 = vmax.f32 %v787, 0.0
      %v852 = vmax.f32 %v788, 0.0
      %v853 = vmax.f32 %v789, 0.0
      %v854 = vmax.f32 %v790, 0.0
      %v855 = vmax.f32 %v791, 0.0
      %v856 = vmax.f32 %v792, 0.0
      %v857 = vmax.f32 %v793, 0.0
      %v858 = vmax.f32 %v794, 0.0
      %v859 = vmax.f32 %v795, 0.0
      %v860 = vmax.f32 %v796, 0.0
      %v861 = vmax.f32 %v797, 0.0
      %v862 = vmax.f32 %v798, 0.0
      %v863 = vmax.f32 %v799, 0.0
      %v864 = vmax.f32 %v800, 0.0
      %v865 = vmax.f32 %v801, 0.0
      %v866 = vmax.f32 %v802, 0.0
      %v867 = vmax.f32 %v803, 0.0
      %v868 = vmax.f32 %v804, 0.0
      %v869 = vmax.f32 %v805, 0.0
      %v870 = vmax.f32 %v806, 0.0
      %v871 = vmax.f32 %v807, 0.0
      %872 = vst [vmem:[%s199] sm:$0xff] %v808
      %873 = vst [vmem:[%s199 + $0x8] sm:$0xff] %v809
      %874 = vst [vmem:[%s199 + $0x10] sm:$0xff] %v810
      %875 = vst [vmem:[%s199 + $0x18] sm:$0xff] %v811
      %876 = vst [vmem:[%s199 + $0x20] sm:$0xff] %v812
      %877 = vst [vmem:[%s199 + $0x28] sm:$0xff] %v813
      %878 = vst [vmem:[%s199 + $0x30] sm:$0xff] %v814
      %879 = vst [vmem:[%s199 + $0x38] sm:$0xff] %v815
      %880 = vst [vmem:[%s199 + $0x40] sm:$0xff] %v816
      %881 = vst [vmem:[%s199 + $0x48] sm:$0xff] %v817
      %882 = vst [vmem:[%s199 + $0x50] sm:$0xff] %v818
      %883 = vst [vmem:[%s199 + $0x58] sm:$0xff] %v819
      %884 = vst [vmem:[%s199 + $0x60] sm:$0xff] %v820
      %885 = vst [vmem:[%s199 + $0x68] sm:$0xff] %v821
      %886 = vst [vmem:[%s199 + $0x70] sm:$0xff] %v822
      %887 = vst [vmem:[%s199 + $0x78] sm:$0xff] %v823
      %888 = vst [vmem:[%s199 + $0x80] sm:$0xff] %v824
      %889 = vst [vmem:[%s199 + $0x88] sm:$0xff] %v825
      %890 = vst [vmem:[%s199 + $0x90] sm:$0xff] %v826
      %891 = vst [vmem:[%s199 + $0x98] sm:$0xff] %v827
      %892 = vst [vmem:[%s199 + $0xa0] sm:$0xff] %v828
      %893 = vst [vmem:[%s199 + $0xa8] sm:$0xff] %v829
      %894 = vst [vmem:[%s199 + $0xb0] sm:$0xff] %v830
      %895 = vst [vmem:[%s199 + $0xb8] sm:$0xff] %v831
      %896 = vst [vmem:[%s199 + $0xc0] sm:$0xff] %v832
      %897 = vst [vmem:[%s199 + $0xc8] sm:$0xff] %v833
      %898 = vst [vmem:[%s199 + $0xd0] sm:$0xff] %v834
      %899 = vst [vmem:[%s199 + $0xd8] sm:$0xff] %v835
      %900 = vst [vmem:[%s199 + $0xe0] sm:$0xff] %v836
      %901 = vst [vmem:[%s199 + $0xe8] sm:$0xff] %v837
      %902 = vst [vmem:[%s199 + $0xf0] sm:$0xff] %v838
      %903 = vst [vmem:[%s199 + $0xf8] sm:$0xff] %v839
      %904 = vst [vmem:[%s199 + $0x100] sm:$0xff] %v840
      %905 = vst [vmem:[%s199 + $0x108] sm:$0xff] %v841
      %906 = vst [vmem:[%s199 + $0x110] sm:$0xff] %v842
      %907 = vst [vmem:[%s199 + $0x118] sm:$0xff] %v843
      %908 = vst [vmem:[%s199 + $0x120] sm:$0xff] %v844
      %909 = vst [vmem:[%s199 + $0x128] sm:$0xff] %v845
      %910 = vst [vmem:[%s199 + $0x130] sm:$0xff] %v846
      %911 = vst [vmem:[%s199 + $0x138] sm:$0xff] %v847
      %912 = vst [vmem:[%s199 + $0x140] sm:$0xff] %v848
      %913 = vst [vmem:[%s199 + $0x148] sm:$0xff] %v849
      %914 = vst [vmem:[%s199 + $0x150] sm:$0xff] %v850
      %915 = vst [vmem:[%s199 + $0x158] sm:$0xff] %v851
      %916 = vst [vmem:[%s199 + $0x160] sm:$0xff] %v852
      %917 = vst [vmem:[%s199 + $0x168] sm:$0xff] %v853
      %918 = vst [vmem:[%s199 + $0x170] sm:$0xff] %v854
      %919 = vst [vmem:[%s199 + $0x178] sm:$0xff] %v855
      %920 = vst [vmem:[%s199 + $0x180] sm:$0xff] %v856
      %921 = vst [vmem:[%s199 + $0x188] sm:$0xff] %v857
      %922 = vst [vmem:[%s199 + $0x190] sm:$0xff] %v858
      %923 = vst [vmem:[%s199 + $0x198] sm:$0xff] %v859
      %924 = vst [vmem:[%s199 + $0x1a0] sm:$0xff] %v860
      %925 = vst [vmem:[%s199 + $0x1a8] sm:$0xff] %v861
      %926 = vst [vmem:[%s199 + $0x1b0] sm:$0xff] %v862
      %927 = vst [vmem:[%s199 + $0x1b8] sm:$0xff] %v863
      %928 = vst [vmem:[%s199 + $0x1c0] sm:$0xff] %v864
      %929 = vst [vmem:[%s199 + $0x1c8] sm:$0xff] %v865
      %930 = vst [vmem:[%s199 + $0x1d0] sm:$0xff] %v866
      %931 = vst [vmem:[%s199 + $0x1d8] sm:$0xff] %v867
      %932 = vst [vmem:[%s199 + $0x1e0] sm:$0xff] %v868
      %933 = vst [vmem:[%s199 + $0x1e8] sm:$0xff] %v869
      %934 = vst [vmem:[%s199 + $0x1f0] sm:$0xff] %v870
      %935 = vst [vmem:[%s199 + $0x1f8] sm:$0xff] %v871
      %s936 = smul.u32 64, %s15
      %p937 = scmp.lt.s32.totalorder %s936, 127
      %s938 = scalar_select %p937, %s936, 127
      %s939 = smul.addr %s938, 8
      %s940 = scalar_lea.vmem %s4, %s939
      // Predicated region
      $region37: #{conv_batchnorm_relu.3} parent=35 // pred_check
        %p941 = pneg %p122
      $region38: #{conv_batchnorm_relu.3} parent=35 // pred_check_branch
        %943 = sbr.rel (%p941) target = $region40
      $region39: #{conv_batchnorm_relu.3} parent=35 // pred_region
        %s944 = smul.u32 64, %s15
      $region40: #{conv_batchnorm_relu.3} parent=35 // pred_fallthru
        _
    $region36: #{conv_batchnorm_relu.3} parent=5 // pred_fallthru
      _
    %p945 = scmp.le.s32.totalorder 2, %s10
    // Predicated region
    $region41: #{conv_batchnorm_relu.3} parent=5 // pred_check
      %p946 = pneg %p945
    $region42: #{conv_batchnorm_relu.3} parent=5 // pred_check_branch
      %948 = sbr.rel (%p946) target = $region44
    $region43: #{conv_batchnorm_relu.3} parent=5 // pred_region
      %s949 = ssub.s32 %s10, 2
      // Predicated region
      $region45: #{conv_batchnorm_relu.3} parent=43 // pred_check
        %p950 = pneg %p128
      $region46: #{conv_batchnorm_relu.3} parent=43 // pred_check_branch
        %952 = sbr.rel (%p950) target = $region48
      $region47: #{conv_batchnorm_relu.3} parent=43 // pred_region
        %s953 = smul.u32 64, %s16
        %p954 = scmp.lt.s32.totalorder %s953, 127
        %s955 = scalar_select %p954, %s953, 127
        %s956 = smul.addr %s955, 8
        %s957 = scalar_lea.vmem %s4, %s956
      $region48: #{conv_batchnorm_relu.3} parent=43 // pred_fallthru
        _
    $region44: #{conv_batchnorm_relu.3} parent=5 // pred_fallthru
      _
  $region6: #{conv_batchnorm_relu.3} parent=0 // loop_footer
    %s14 = sadd.s32 1, %s10
  $region7: #{conv_batchnorm_relu.3} parent=0 // loop_footer_branch
    %9 = sbr.rel target = $region3
  $region8: #{conv_batchnorm_relu.3} parent=0 // loop_exit
    _

</llo_original>
